<compile_context>
chip_gen: v7x
topology: tpu7x:2x2x1
jax: 0.10.0
libtpu: 0.0.40
codegen_flags: <defaults>
</compile_context>

<pallas_src>
import jax
import jax.numpy as jnp
from jax.experimental import pallas as pl
from jax.experimental.pallas import tpu as pltpu

NUM_CLASSES = 10
K = 5  # MeshConv kernel width == neighborhood size


def _round_up(a, m):
    return (a + m - 1) // m * m


# ----------------------------------------------------------------------------
# Pallas kernel: full MeshCNN forward for TB samples per grid step.
#   x_ref  : (K, TB, K*K*Cin)  im2col rows, one leading slab per conv1 output pos w
#   w1_ref : (K*K*Cin, K*64)   block-diagonal conv1 weight (per sym-feature block)
#   w2_ref : (K*64, 128)       conv2 weight with (sym, chan) contraction fused
#   out_ref: (TB, 128)         class dim zero-padded to 128 lanes
# ----------------------------------------------------------------------------
def _meshcnn_kernel(x_ref, w1_ref, b1_ref, w2_ref, b2_ref,
                    wl_ref, bl_ref, wf1_ref, bf1_ref, wf2_ref, bf2_ref,
                    out_ref):
    tb = x_ref.shape[1]

    def mm(a, w_ref):
        w = w_ref[...]
        # cast activations to the weight dtype (bf16 option), accumulate in f32 on the MXU
        return jnp.dot(a.astype(w.dtype), w, preferred_element_type=jnp.float32)

    # ---- MeshConv1 + ReLU: one K=75 dot per conv1 output position w (M = TB each) ----
    b1b = jnp.broadcast_to(b1_ref[...], (tb, w1_ref.shape[1]))        # hoisted bias broadcast
    y = [jnp.maximum(mm(x_ref[w], w1_ref) + b1b, 0.0) for w in range(K)]   # 5 x (TB, 320)

    # ---- MeshConv2 symmetric features over conv1's 5 output positions ----
    # (g = 4 is never consumed: MaxPool1d(2) on length 5 keeps only pairs (0,1),(2,3))
    g = [y[0], y[1] + y[3], y[2] + y[4], jnp.abs(y[1] - y[3])]        # 4 x (TB, 320)

    # ---- MeshConv2 + ReLU: fused K=320 contraction, one dot per kept g (M = TB each) ----
    b2b = jnp.broadcast_to(b2_ref[...], (tb, w2_ref.shape[1]))
    z = [jnp.maximum(mm(gi, w2_ref) + b2b, 0.0) for gi in g]          # 4 x (TB, 128)

    # ---- MeshPool: MaxPool1d(2) over g, Linear(128->64), ReLU ----
    blb = jnp.broadcast_to(bl_ref[...], (tb, wl_ref.shape[1]))
    l0 = jnp.maximum(mm(jnp.maximum(z[0], z[1]), wl_ref) + blb, 0.0)  # (TB, 64)
    l1 = jnp.maximum(mm(jnp.maximum(z[2], z[3]), wl_ref) + blb, 0.0)  # (TB, 64)

    # ---- global max over the two pooled positions, fc1 + ReLU, fc2 (lane-dense) ----
    feat = jnp.maximum(l0, l1)                                        # (TB, 64)
    f1 = jnp.maximum(mm(feat, wf1_ref) + bf1_ref[...], 0.0)           # (TB, 256)
    out_ref[...] = (mm(f1, wf2_ref) + bf2_ref[...]).astype(out_ref.dtype)   # (TB, 128)


# ----------------------------------------------------------------------------
# Wrapper: layout glue (im2col, weight repacking, batch padding) + pallas_call
# ----------------------------------------------------------------------------
def meshcnn_forward(x, params, *, block_batch=256, matmul_dtype=jnp.float32):
    """x: (N, 3, F, 5) float32 in the PyTorch (N, C, F, V) layout. Returns (N, num_classes)."""
    n, c_in, f, v = x.shape
    assert v == K and f >= 2 * K - 1

    xf = x.astype(jnp.float32)

    # MeshConv1 symmetric neighbor features (pure layout/VPU prep, done once in the wrapper).
    sym = jnp.stack([xf[..., 0],
                     xf[..., 1] + xf[..., 3],
                     xf[..., 2] + xf[..., 4],
                     jnp.abs(xf[..., 1] - xf[..., 3]),
                     jnp.abs(xf[..., 2] - xf[..., 4])], axis=2)       # (N, C, 5_s, F)

    # im2col over the first K conv1 output positions (the only ones MeshConv2 consumes):
    #   col[n, w, s*K*C + kw*C + c] = sym[n, c, s, w + kw]
    w_idx = jnp.arange(K)[:, None] + jnp.arange(K)[None, :]           # (5_w, 5_kw)
    patches = sym[:, :, :, w_idx]                                     # (N, C, 5_s, 5_w, 5_kw)
    kc = K * K * c_in                                                 # 75
    col = jnp.transpose(patches, (0, 3, 2, 4, 1)).reshape(n, K, kc)   # (N, 5_w, 75)

    # Batch tile: multiple of 8 sublanes; keep >= 2 grid steps for v7x's two TCs when N allows.
    tb = _round_up(max(8, min(int(block_batch), _round_up(n, 8))), 8)
    n_pad = _round_up(n, tb)
    if n_pad != n:
        col = jnp.pad(col, ((0, n_pad - n), (0, 0), (0, 0)))
    md = jnp.dtype(matmul_dtype)
    colk = jnp.transpose(col, (1, 0, 2)).astype(md)                   # (5_w, N_pad, 75)

    # ---- repack weights ----
    o1 = params["conv1_b"].shape[0]                                   # 64
    o2 = params["conv2_b"].shape[0]                                   # 128

    w1r = jnp.transpose(params["conv1_w"][:, :, 0, :], (2, 1, 0)).reshape(K * c_in, o1)  # (15, 64)
    w1big = jnp.kron(jnp.eye(K, dtype=jnp.float32), w1r)              # (75, 320) block-diag over s
    b1big = jnp.tile(params["conv1_b"], K).reshape(1, K * o1)         # (1, 320)

    w2big = jnp.transpose(params["conv2_w"][:, :, 0, :], (2, 1, 0)).reshape(K * o1, o2)  # (320, 128)
    b2r = params["conv2_b"].reshape(1, o2)

    wl = params["pool_lin_w"].T                                       # (128, 64)
    bl = params["pool_lin_b"].reshape(1, -1)
    wf1 = params["fc1_w"].T                                           # (64, 256)
    bf1 = params["fc1_b"].reshape(1, -1)

    nc = params["fc2_w"].shape[0]
    nc_pad = _round_up(max(nc, 128), 128)                             # lane-dense output
    wf2 = jnp.zeros((params["fc2_w"].shape[1], nc_pad), jnp.float32).at[:, :nc].set(params["fc2_w"].T)
    bf2 = jnp.zeros((1, nc_pad), jnp.float32).at[:, :nc].set(params["fc2_b"][None, :])

    w1big, w2big, wl, wf1, wf2 = (w.astype(md) for w in (w1big, w2big, wl, wf1, wf2))

    def _const_spec(shape):
        nz = len(shape)
        return pl.BlockSpec(shape, lambda b, _n=nz: (0,) * _n)

    grid = (n_pad // tb,)
    grid_spec = pltpu.PrefetchScalarGridSpec(
        num_scalar_prefetch=0,
        grid=grid,
        in_specs=[
            pl.BlockSpec((K, tb, kc), lambda b: (0, b, 0)),
            _const_spec(w1big.shape), _const_spec(b1big.shape),
            _const_spec(w2big.shape), _const_spec(b2r.shape),
            _const_spec(wl.shape), _const_spec(bl.shape),
            _const_spec(wf1.shape), _const_spec(bf1.shape),
            _const_spec(wf2.shape), _const_spec(bf2.shape),
        ],
        out_specs=pl.BlockSpec((tb, nc_pad), lambda b: (b, 0)),
    )

    flops_per_sample = 2 * (K * kc * w1big.shape[1]
                            + 4 * w2big.shape[0] * w2big.shape[1]
                            + 2 * wl.shape[0] * wl.shape[1]
                            + wf1.shape[0] * wf1.shape[1]
                            + wf2.shape[0] * wf2.shape[1])
    weight_bytes = sum(int(w.size) * w.dtype.itemsize
                       for w in (w1big, b1big, w2big, b2r, wl, bl, wf1, bf1, wf2, bf2))
    cost = pl.CostEstimate(
        flops=int(flops_per_sample) * int(n_pad),
        transcendentals=0,
        bytes_accessed=int(colk.size) * colk.dtype.itemsize + int(n_pad) * nc_pad * 4 + weight_bytes,
    )

    out = pl.pallas_call(
        _meshcnn_kernel,
        out_shape=jax.ShapeDtypeStruct((n_pad, nc_pad), jnp.float32),
        grid_spec=grid_spec,
        compiler_params=pltpu.CompilerParams(dimension_semantics=("parallel",)),
        cost_estimate=cost,
    )(colk, w1big, b1big, w2big, b2r, wl, bl, wf1, bf1, wf2, bf2)
    return out[:n, :nc]


# ----------------------------------------------------------------------------
# Deterministic parameter init (PyTorch-style uniform(-1/sqrt(fan_in), 1/sqrt(fan_in)))
# ----------------------------------------------------------------------------
def init_params(key, num_classes=NUM_CLASSES):
    def uni(k, shape, fan_in):
        bound = 1.0 / (fan_in ** 0.5)
        return jax.random.uniform(k, shape, jnp.float32, -bound, bound)

    ks = jax.random.split(key, 10)
    return {
        "conv1_w": uni(ks[0], (64, 3, 1, K), 3 * K),
        "conv1_b": uni(ks[1], (64,), 3 * K),
        "conv2_w": uni(ks[2], (128, 64, 1, K), 64 * K),
        "conv2_b": uni(ks[3], (128,), 64 * K),
        "pool_lin_w": uni(ks[4], (64, 128), 128),
        "pool_lin_b": uni(ks[5], (64,), 128),
        "fc1_w": uni(ks[6], (256, 64), 64),
        "fc1_b": uni(ks[7], (256,), 64),
        "fc2_w": uni(ks[8], (num_classes, 256), 256),
        "fc2_b": uni(ks[9], (num_classes,), 256),
    }


# ----------------------------------------------------------------------------
# Plain-JAX reference (follows the PyTorch code, NCHW layout) for validation
# ----------------------------------------------------------------------------
def meshcnn_reference(x, p):
    def mesh_conv(x, w, b):
        x1 = x[:, :, :, 1] + x[:, :, :, 3]
        x2 = x[:, :, :, 2] + x[:, :, :, 4]
        x3 = jnp.abs(x[:, :, :, 1] - x[:, :, :, 3])
        x4 = jnp.abs(x[:, :, :, 2] - x[:, :, :, 4])
        xs = jnp.stack([x[:, :, :, 0], x1, x2, x3, x4], axis=2)      # (N, C, 5, W)
        y = jax.lax.conv_general_dilated(
            xs, w, window_strides=(1, 1), padding="VALID",
            dimension_numbers=("NCHW", "OIHW", "NCHW"))
        return y + b[None, :, None, None]

    y = jax.nn.relu(mesh_conv(x, p["conv1_w"], p["conv1_b"]))        # (N, 64, 5, F-4)
    y = jax.nn.relu(mesh_conv(y, p["conv2_w"], p["conv2_b"]))        # (N, 128, 5, 1)
    y = y[..., 0]                                                    # (N, 128, 5)  [see TODO(synk)]
    y = jnp.maximum(y[:, :, 0:4:2], y[:, :, 1:4:2])                  # (N, 128, 2)  MaxPool1d(2)
    y = jnp.einsum("ncv,oc->nov", y, p["pool_lin_w"]) + p["pool_lin_b"][None, :, None]
    y = jax.nn.relu(y)                                               # (N, 64, 2)
    y = jnp.max(y, axis=2)                                           # (N, 64)
    y = jax.nn.relu(y @ p["fc1_w"].T + p["fc1_b"])                   # (N, 256)
    return y @ p["fc2_w"].T + p["fc2_b"]                             # (N, num_classes)


if __name__ == "__main__":
    key = jax.random.PRNGKey(0)
    pkey, xkey = jax.random.split(key)
    params = init_params(pkey)

    N, C, F, V = 2, 3, 16, 5
    x = jax.random.normal(xkey, (N, C, F, V), jnp.float32)

    fwd = jax.jit(meshcnn_forward)
    out = jax.block_until_ready(fwd(x, params))
    ref = jax.block_until_ready(meshcnn_reference(x, params))

    assert out.shape == (N, NUM_CLASSES), out.shape
    assert bool(jnp.allclose(out, ref, atol=2e-2, rtol=2e-2)), (
        f"max abs diff = {float(jnp.max(jnp.abs(out - ref)))}")
    print("KERNEL_OK")
</pallas_src>

<mosaic_0001>
module attributes {stable_mosaic.version = 11 : i64} {
  func.func @_meshcnn_kernel(%arg0: i32, %arg1: memref<5x8x75xf32, #tpu.memory_space<vmem>>, %arg2: memref<75x320xf32, #tpu.memory_space<vmem>>, %arg3: memref<1x320xf32, #tpu.memory_space<vmem>>, %arg4: memref<320x128xf32, #tpu.memory_space<vmem>>, %arg5: memref<1x128xf32, #tpu.memory_space<vmem>>, %arg6: memref<128x64xf32, #tpu.memory_space<vmem>>, %arg7: memref<1x64xf32, #tpu.memory_space<vmem>>, %arg8: memref<64x256xf32, #tpu.memory_space<vmem>>, %arg9: memref<1x256xf32, #tpu.memory_space<vmem>>, %arg10: memref<256x128xf32, #tpu.memory_space<vmem>>, %arg11: memref<1x128xf32, #tpu.memory_space<vmem>>, %arg12: memref<8x128xf32, #tpu.memory_space<vmem>>) attributes {dimension_semantics = [#tpu.dimension_semantics<parallel>], iteration_bounds = array<i64: 1>, scalar_prefetch = 0 : i64, scratch_operands = 0 : i64, tpu.core_type = #tpu.core_type<tc>, window_params = [{transform_indices = @transform_0, window_bounds = array<i64: 5, 8, 75>}, {pipeline_mode = #tpu.pipeline_mode<synchronous>, transform_indices = @transform_1, window_bounds = array<i64: 75, 320>}, {pipeline_mode = #tpu.pipeline_mode<synchronous>, transform_indices = @transform_2, window_bounds = array<i64: 1, 320>}, {pipeline_mode = #tpu.pipeline_mode<synchronous>, transform_indices = @transform_3, window_bounds = array<i64: 320, 128>}, {pipeline_mode = #tpu.pipeline_mode<synchronous>, transform_indices = @transform_4, window_bounds = array<i64: 1, 128>}, {pipeline_mode = #tpu.pipeline_mode<synchronous>, transform_indices = @transform_5, window_bounds = array<i64: 128, 64>}, {pipeline_mode = #tpu.pipeline_mode<synchronous>, transform_indices = @transform_6, window_bounds = array<i64: 1, 64>}, {pipeline_mode = #tpu.pipeline_mode<synchronous>, transform_indices = @transform_7, window_bounds = array<i64: 64, 256>}, {pipeline_mode = #tpu.pipeline_mode<synchronous>, transform_indices = @transform_8, window_bounds = array<i64: 1, 256>}, {pipeline_mode = #tpu.pipeline_mode<synchronous>, transform_indices = @transform_9, window_bounds = array<i64: 256, 128>}, {pipeline_mode = #tpu.pipeline_mode<synchronous>, transform_indices = @transform_10, window_bounds = array<i64: 1, 128>}, {transform_indices = @transform_11, window_bounds = array<i64: 8, 128>}]} {
    %c0 = arith.constant 0 : index
    %c0_0 = arith.constant 0 : index
    %0 = vector.load %arg3[%c0, %c0_0] : memref<1x320xf32, #tpu.memory_space<vmem>>, vector<1x320xf32>
    %1 = vector.shape_cast %0 : vector<1x320xf32> to vector<1x320xf32>
    %2 = vector.broadcast %1 : vector<1x320xf32> to vector<8x320xf32>
    %c0_1 = arith.constant 0 : index
    %c0_2 = arith.constant 0 : index
    %c0_3 = arith.constant 0 : index
    %3 = vector.load %arg1[%c0_1, %c0_2, %c0_3] : memref<5x8x75xf32, #tpu.memory_space<vmem>>, vector<1x8x75xf32>
    %4 = vector.shape_cast %3 : vector<1x8x75xf32> to vector<8x75xf32>
    %c0_4 = arith.constant 0 : index
    %c0_5 = arith.constant 0 : index
    %5 = vector.load %arg2[%c0_4, %c0_5] : memref<75x320xf32, #tpu.memory_space<vmem>>, vector<75x320xf32>
    %cst = arith.constant dense<0.000000e+00> : vector<8x320xf32>
    %6 = tpu.matmul %4, %5, %cst {dimension_numbers = #tpu.dot_dimension_numbers<[1], [0], [0], [1], [0, 0, 1, 1], [], []>} : vector<8x75xf32>, vector<75x320xf32>, vector<8x320xf32> -> vector<8x320xf32>
    %7 = arith.addf %6, %2 : vector<8x320xf32>
    %cst_6 = arith.constant 0.000000e+00 : f32
    %8 = vector.broadcast %cst_6 : f32 to vector<8x320xf32>
    %9 = arith.maximumf %7, %8 : vector<8x320xf32>
    %c1 = arith.constant 1 : index
    %c0_7 = arith.constant 0 : index
    %c0_8 = arith.constant 0 : index
    %10 = vector.load %arg1[%c1, %c0_7, %c0_8] : memref<5x8x75xf32, #tpu.memory_space<vmem>>, vector<1x8x75xf32>
    %11 = vector.shape_cast %10 : vector<1x8x75xf32> to vector<8x75xf32>
    %c0_9 = arith.constant 0 : index
    %c0_10 = arith.constant 0 : index
    %12 = vector.load %arg2[%c0_9, %c0_10] : memref<75x320xf32, #tpu.memory_space<vmem>>, vector<75x320xf32>
    %cst_11 = arith.constant dense<0.000000e+00> : vector<8x320xf32>
    %13 = tpu.matmul %11, %12, %cst_11 {dimension_numbers = #tpu.dot_dimension_numbers<[1], [0], [0], [1], [0, 0, 1, 1], [], []>} : vector<8x75xf32>, vector<75x320xf32>, vector<8x320xf32> -> vector<8x320xf32>
    %14 = arith.addf %13, %2 : vector<8x320xf32>
    %cst_12 = arith.constant 0.000000e+00 : f32
    %15 = vector.broadcast %cst_12 : f32 to vector<8x320xf32>
    %16 = arith.maximumf %14, %15 : vector<8x320xf32>
    %c2 = arith.constant 2 : index
    %c0_13 = arith.constant 0 : index
    %c0_14 = arith.constant 0 : index
    %17 = vector.load %arg1[%c2, %c0_13, %c0_14] : memref<5x8x75xf32, #tpu.memory_space<vmem>>, vector<1x8x75xf32>
    %18 = vector.shape_cast %17 : vector<1x8x75xf32> to vector<8x75xf32>
    %c0_15 = arith.constant 0 : index
    %c0_16 = arith.constant 0 : index
    %19 = vector.load %arg2[%c0_15, %c0_16] : memref<75x320xf32, #tpu.memory_space<vmem>>, vector<75x320xf32>
    %cst_17 = arith.constant dense<0.000000e+00> : vector<8x320xf32>
    %20 = tpu.matmul %18, %19, %cst_17 {dimension_numbers = #tpu.dot_dimension_numbers<[1], [0], [0], [1], [0, 0, 1, 1], [], []>} : vector<8x75xf32>, vector<75x320xf32>, vector<8x320xf32> -> vector<8x320xf32>
    %21 = arith.addf %20, %2 : vector<8x320xf32>
    %cst_18 = arith.constant 0.000000e+00 : f32
    %22 = vector.broadcast %cst_18 : f32 to vector<8x320xf32>
    %23 = arith.maximumf %21, %22 : vector<8x320xf32>
    %c3 = arith.constant 3 : index
    %c0_19 = arith.constant 0 : index
    %c0_20 = arith.constant 0 : index
    %24 = vector.load %arg1[%c3, %c0_19, %c0_20] : memref<5x8x75xf32, #tpu.memory_space<vmem>>, vector<1x8x75xf32>
    %25 = vector.shape_cast %24 : vector<1x8x75xf32> to vector<8x75xf32>
    %c0_21 = arith.constant 0 : index
    %c0_22 = arith.constant 0 : index
    %26 = vector.load %arg2[%c0_21, %c0_22] : memref<75x320xf32, #tpu.memory_space<vmem>>, vector<75x320xf32>
    %cst_23 = arith.constant dense<0.000000e+00> : vector<8x320xf32>
    %27 = tpu.matmul %25, %26, %cst_23 {dimension_numbers = #tpu.dot_dimension_numbers<[1], [0], [0], [1], [0, 0, 1, 1], [], []>} : vector<8x75xf32>, vector<75x320xf32>, vector<8x320xf32> -> vector<8x320xf32>
    %28 = arith.addf %27, %2 : vector<8x320xf32>
    %cst_24 = arith.constant 0.000000e+00 : f32
    %29 = vector.broadcast %cst_24 : f32 to vector<8x320xf32>
    %30 = arith.maximumf %28, %29 : vector<8x320xf32>
    %c4 = arith.constant 4 : index
    %c0_25 = arith.constant 0 : index
    %c0_26 = arith.constant 0 : index
    %31 = vector.load %arg1[%c4, %c0_25, %c0_26] : memref<5x8x75xf32, #tpu.memory_space<vmem>>, vector<1x8x75xf32>
    %32 = vector.shape_cast %31 : vector<1x8x75xf32> to vector<8x75xf32>
    %c0_27 = arith.constant 0 : index
    %c0_28 = arith.constant 0 : index
    %33 = vector.load %arg2[%c0_27, %c0_28] : memref<75x320xf32, #tpu.memory_space<vmem>>, vector<75x320xf32>
    %cst_29 = arith.constant dense<0.000000e+00> : vector<8x320xf32>
    %34 = tpu.matmul %32, %33, %cst_29 {dimension_numbers = #tpu.dot_dimension_numbers<[1], [0], [0], [1], [0, 0, 1, 1], [], []>} : vector<8x75xf32>, vector<75x320xf32>, vector<8x320xf32> -> vector<8x320xf32>
    %35 = arith.addf %34, %2 : vector<8x320xf32>
    %cst_30 = arith.constant 0.000000e+00 : f32
    %36 = vector.broadcast %cst_30 : f32 to vector<8x320xf32>
    %37 = arith.maximumf %35, %36 : vector<8x320xf32>
    %38 = arith.addf %16, %30 : vector<8x320xf32>
    %39 = arith.addf %23, %37 : vector<8x320xf32>
    %40 = arith.subf %16, %30 : vector<8x320xf32>
    %41 = math.absf %40 : vector<8x320xf32>
    %c0_31 = arith.constant 0 : index
    %c0_32 = arith.constant 0 : index
    %42 = vector.load %arg5[%c0_31, %c0_32] : memref<1x128xf32, #tpu.memory_space<vmem>>, vector<1x128xf32>
    %43 = vector.shape_cast %42 : vector<1x128xf32> to vector<1x128xf32>
    %44 = vector.broadcast %43 : vector<1x128xf32> to vector<8x128xf32>
    %c0_33 = arith.constant 0 : index
    %c0_34 = arith.constant 0 : index
    %45 = vector.load %arg4[%c0_33, %c0_34] : memref<320x128xf32, #tpu.memory_space<vmem>>, vector<320x128xf32>
    %cst_35 = arith.constant dense<0.000000e+00> : vector<8x128xf32>
    %46 = tpu.matmul %9, %45, %cst_35 {dimension_numbers = #tpu.dot_dimension_numbers<[1], [0], [0], [1], [0, 0, 1, 1], [], []>} : vector<8x320xf32>, vector<320x128xf32>, vector<8x128xf32> -> vector<8x128xf32>
    %47 = arith.addf %46, %44 : vector<8x128xf32>
    %cst_36 = arith.constant 0.000000e+00 : f32
    %48 = vector.broadcast %cst_36 : f32 to vector<8x128xf32>
    %49 = arith.maximumf %47, %48 : vector<8x128xf32>
    %c0_37 = arith.constant 0 : index
    %c0_38 = arith.constant 0 : index
    %50 = vector.load %arg4[%c0_37, %c0_38] : memref<320x128xf32, #tpu.memory_space<vmem>>, vector<320x128xf32>
    %cst_39 = arith.constant dense<0.000000e+00> : vector<8x128xf32>
    %51 = tpu.matmul %38, %50, %cst_39 {dimension_numbers = #tpu.dot_dimension_numbers<[1], [0], [0], [1], [0, 0, 1, 1], [], []>} : vector<8x320xf32>, vector<320x128xf32>, vector<8x128xf32> -> vector<8x128xf32>
    %52 = arith.addf %51, %44 : vector<8x128xf32>
    %cst_40 = arith.constant 0.000000e+00 : f32
    %53 = vector.broadcast %cst_40 : f32 to vector<8x128xf32>
    %54 = arith.maximumf %52, %53 : vector<8x128xf32>
    %c0_41 = arith.constant 0 : index
    %c0_42 = arith.constant 0 : index
    %55 = vector.load %arg4[%c0_41, %c0_42] : memref<320x128xf32, #tpu.memory_space<vmem>>, vector<320x128xf32>
    %cst_43 = arith.constant dense<0.000000e+00> : vector<8x128xf32>
    %56 = tpu.matmul %39, %55, %cst_43 {dimension_numbers = #tpu.dot_dimension_numbers<[1], [0], [0], [1], [0, 0, 1, 1], [], []>} : vector<8x320xf32>, vector<320x128xf32>, vector<8x128xf32> -> vector<8x128xf32>
    %57 = arith.addf %56, %44 : vector<8x128xf32>
    %cst_44 = arith.constant 0.000000e+00 : f32
    %58 = vector.broadcast %cst_44 : f32 to vector<8x128xf32>
    %59 = arith.maximumf %57, %58 : vector<8x128xf32>
    %c0_45 = arith.constant 0 : index
    %c0_46 = arith.constant 0 : index
    %60 = vector.load %arg4[%c0_45, %c0_46] : memref<320x128xf32, #tpu.memory_space<vmem>>, vector<320x128xf32>
    %cst_47 = arith.constant dense<0.000000e+00> : vector<8x128xf32>
    %61 = tpu.matmul %41, %60, %cst_47 {dimension_numbers = #tpu.dot_dimension_numbers<[1], [0], [0], [1], [0, 0, 1, 1], [], []>} : vector<8x320xf32>, vector<320x128xf32>, vector<8x128xf32> -> vector<8x128xf32>
    %62 = arith.addf %61, %44 : vector<8x128xf32>
    %cst_48 = arith.constant 0.000000e+00 : f32
    %63 = vector.broadcast %cst_48 : f32 to vector<8x128xf32>
    %64 = arith.maximumf %62, %63 : vector<8x128xf32>
    %c0_49 = arith.constant 0 : index
    %c0_50 = arith.constant 0 : index
    %65 = vector.load %arg7[%c0_49, %c0_50] : memref<1x64xf32, #tpu.memory_space<vmem>>, vector<1x64xf32>
    %66 = vector.shape_cast %65 : vector<1x64xf32> to vector<1x64xf32>
    %67 = vector.broadcast %66 : vector<1x64xf32> to vector<8x64xf32>
    %68 = arith.maximumf %49, %54 : vector<8x128xf32>
    %c0_51 = arith.constant 0 : index
    %c0_52 = arith.constant 0 : index
    %69 = vector.load %arg6[%c0_51, %c0_52] : memref<128x64xf32, #tpu.memory_space<vmem>>, vector<128x64xf32>
    %cst_53 = arith.constant dense<0.000000e+00> : vector<8x64xf32>
    %70 = tpu.matmul %68, %69, %cst_53 {dimension_numbers = #tpu.dot_dimension_numbers<[1], [0], [0], [1], [0, 0, 1, 1], [], []>} : vector<8x128xf32>, vector<128x64xf32>, vector<8x64xf32> -> vector<8x64xf32>
    %71 = arith.addf %70, %67 : vector<8x64xf32>
    %cst_54 = arith.constant 0.000000e+00 : f32
    %72 = vector.broadcast %cst_54 : f32 to vector<8x64xf32>
    %73 = arith.maximumf %71, %72 : vector<8x64xf32>
    %74 = arith.maximumf %59, %64 : vector<8x128xf32>
    %c0_55 = arith.constant 0 : index
    %c0_56 = arith.constant 0 : index
    %75 = vector.load %arg6[%c0_55, %c0_56] : memref<128x64xf32, #tpu.memory_space<vmem>>, vector<128x64xf32>
    %cst_57 = arith.constant dense<0.000000e+00> : vector<8x64xf32>
    %76 = tpu.matmul %74, %75, %cst_57 {dimension_numbers = #tpu.dot_dimension_numbers<[1], [0], [0], [1], [0, 0, 1, 1], [], []>} : vector<8x128xf32>, vector<128x64xf32>, vector<8x64xf32> -> vector<8x64xf32>
    %77 = arith.addf %76, %67 : vector<8x64xf32>
    %cst_58 = arith.constant 0.000000e+00 : f32
    %78 = vector.broadcast %cst_58 : f32 to vector<8x64xf32>
    %79 = arith.maximumf %77, %78 : vector<8x64xf32>
    %80 = arith.maximumf %73, %79 : vector<8x64xf32>
    %c0_59 = arith.constant 0 : index
    %c0_60 = arith.constant 0 : index
    %81 = vector.load %arg8[%c0_59, %c0_60] : memref<64x256xf32, #tpu.memory_space<vmem>>, vector<64x256xf32>
    %cst_61 = arith.constant dense<0.000000e+00> : vector<8x256xf32>
    %82 = tpu.matmul %80, %81, %cst_61 {dimension_numbers = #tpu.dot_dimension_numbers<[1], [0], [0], [1], [0, 0, 1, 1], [], []>} : vector<8x64xf32>, vector<64x256xf32>, vector<8x256xf32> -> vector<8x256xf32>
    %c0_62 = arith.constant 0 : index
    %c0_63 = arith.constant 0 : index
    %83 = vector.load %arg9[%c0_62, %c0_63] : memref<1x256xf32, #tpu.memory_space<vmem>>, vector<1x256xf32>
    %84 = vector.broadcast %83 : vector<1x256xf32> to vector<8x256xf32>
    %85 = arith.addf %82, %84 : vector<8x256xf32>
    %cst_64 = arith.constant 0.000000e+00 : f32
    %86 = vector.broadcast %cst_64 : f32 to vector<8x256xf32>
    %87 = arith.maximumf %85, %86 : vector<8x256xf32>
    %c0_65 = arith.constant 0 : index
    %c0_66 = arith.constant 0 : index
    %88 = vector.load %arg10[%c0_65, %c0_66] : memref<256x128xf32, #tpu.memory_space<vmem>>, vector<256x128xf32>
    %cst_67 = arith.constant dense<0.000000e+00> : vector<8x128xf32>
    %89 = tpu.matmul %87, %88, %cst_67 {dimension_numbers = #tpu.dot_dimension_numbers<[1], [0], [0], [1], [0, 0, 1, 1], [], []>} : vector<8x256xf32>, vector<256x128xf32>, vector<8x128xf32> -> vector<8x128xf32>
    %c0_68 = arith.constant 0 : index
    %c0_69 = arith.constant 0 : index
    %90 = vector.load %arg11[%c0_68, %c0_69] : memref<1x128xf32, #tpu.memory_space<vmem>>, vector<1x128xf32>
    %91 = vector.broadcast %90 : vector<1x128xf32> to vector<8x128xf32>
    %92 = arith.addf %89, %91 : vector<8x128xf32>
    %c0_70 = arith.constant 0 : index
    %c0_71 = arith.constant 0 : index
    %93 = vector.load %arg12[%c0_70, %c0_71] : memref<8x128xf32, #tpu.memory_space<vmem>>, vector<8x128xf32>
    tpu.vector_store %arg12[%c0_70, %c0_71], %92 {strides = array<i32>} : memref<8x128xf32, #tpu.memory_space<vmem>>, vector<8x128xf32>,
    return
  }
  func.func @transform_0(%arg0: i32) -> (i32, i32, i32) {
    %c0_i32 = arith.constant 0 : i32
    %c0_i32_0 = arith.constant 0 : i32
    %c0_i32_1 = arith.constant 0 : i32
    return %c0_i32, %arg0, %c0_i32_0 : i32, i32, i32
  }
  func.func @transform_1(%arg0: i32) -> (i32, i32) {
    %c0_i32 = arith.constant 0 : i32
    %c0_i32_0 = arith.constant 0 : i32
    %c0_i32_1 = arith.constant 0 : i32
    return %c0_i32, %c0_i32_0 : i32, i32
  }
  func.func @transform_2(%arg0: i32) -> (i32, i32) {
    %c0_i32 = arith.constant 0 : i32
    %c0_i32_0 = arith.constant 0 : i32
    %c0_i32_1 = arith.constant 0 : i32
    return %c0_i32, %c0_i32_0 : i32, i32
  }
  func.func @transform_3(%arg0: i32) -> (i32, i32) {
    %c0_i32 = arith.constant 0 : i32
    %c0_i32_0 = arith.constant 0 : i32
    %c0_i32_1 = arith.constant 0 : i32
    return %c0_i32, %c0_i32_0 : i32, i32
  }
  func.func @transform_4(%arg0: i32) -> (i32, i32) {
    %c0_i32 = arith.constant 0 : i32
    %c0_i32_0 = arith.constant 0 : i32
    %c0_i32_1 = arith.constant 0 : i32
    return %c0_i32, %c0_i32_0 : i32, i32
  }
  func.func @transform_5(%arg0: i32) -> (i32, i32) {
    %c0_i32 = arith.constant 0 : i32
    %c0_i32_0 = arith.constant 0 : i32
    %c0_i32_1 = arith.constant 0 : i32
    return %c0_i32, %c0_i32_0 : i32, i32
  }
  func.func @transform_6(%arg0: i32) -> (i32, i32) {
    %c0_i32 = arith.constant 0 : i32
    %c0_i32_0 = arith.constant 0 : i32
    %c0_i32_1 = arith.constant 0 : i32
    return %c0_i32, %c0_i32_0 : i32, i32
  }
  func.func @transform_7(%arg0: i32) -> (i32, i32) {
    %c0_i32 = arith.constant 0 : i32
    %c0_i32_0 = arith.constant 0 : i32
    %c0_i32_1 = arith.constant 0 : i32
    return %c0_i32, %c0_i32_0 : i32, i32
  }
  func.func @transform_8(%arg0: i32) -> (i32, i32) {
    %c0_i32 = arith.constant 0 : i32
    %c0_i32_0 = arith.constant 0 : i32
    %c0_i32_1 = arith.constant 0 : i32
    return %c0_i32, %c0_i32_0 : i32, i32
  }
  func.func @transform_9(%arg0: i32) -> (i32, i32) {
    %c0_i32 = arith.constant 0 : i32
    %c0_i32_0 = arith.constant 0 : i32
    %c0_i32_1 = arith.constant 0 : i32
    return %c0_i32, %c0_i32_0 : i32, i32
  }
  func.func @transform_10(%arg0: i32) -> (i32, i32) {
    %c0_i32 = arith.constant 0 : i32
    %c0_i32_0 = arith.constant 0 : i32
    %c0_i32_1 = arith.constant 0 : i32
    return %c0_i32, %c0_i32_0 : i32, i32
  }
  func.func @transform_11(%arg0: i32) -> (i32, i32) {
    %c0_i32 = arith.constant 0 : i32
    %c0_i32_0 = arith.constant 0 : i32
    return %arg0, %c0_i32 : i32, i32
  }
}

</mosaic_0001>

<llo_original>
// kernel: mul.4
$region0: #{mul.4}
  %s0 = inlined_call_operand.vmem [shape: f32[5,3,64], index: 0, kind: input, shape index: {}]
  %s1 = inlined_call_operand.vmem [shape: f32[15,64], index: 1, kind: output, shape index: {}]
  $region1: #{mul.4} parent=0
    #allocation0 [shape = 'u8[20480]{0}', space=vmem, size = 0x5000, scoped, tag = 'scoped mem for input reshape']
    %s3 = sshllo.u32 0, 4
    %s4 = smul.addr 4, 4
    %s5 = scalar_lea.vmem %s0, %s4
    %v6 = vld [vmem:[%s5] sm:%s3]
    %s7 = scalar_lea.vmem [#allocation0], 32
    %8 = vst [vmem:[%s7] sm:%s3] %v6
    %s9 = smul.addr 4, 3
    %s10 = scalar_lea.vmem %s0, %s9
    %v11 = vld [vmem:[%s10] sm:%s3]
    %s12 = scalar_lea.vmem [#allocation0], 24
    %13 = vst [vmem:[%s12] sm:%s3] %v11
    %s14 = smul.addr 4, 2
    %s15 = scalar_lea.vmem %s0, %s14
    %v16 = vld [vmem:[%s15] sm:%s3]
    %s17 = scalar_lea.vmem [#allocation0], 16
    %18 = vst [vmem:[%s17] sm:%s3] %v16
    %s19 = scalar_lea.vmem %s0, 4
    %v20 = vld [vmem:[%s19] sm:%s3]
    %s21 = scalar_lea.vmem [#allocation0], 8
    %22 = vst [vmem:[%s21] sm:%s3] %v20
    %v23 = vld [vmem:[%s0] sm:%s3]
    %24 = vst [vmem:[#allocation0] sm:%s3] %v23
    %v25 = vld [vmem:[#allocation0] sm:$0x7]
    %vm26 = vcmask 523264
    %27 = vst.msk [vmem:[%s1] sm:$0x7] %vm26, %v25
    %s28 = scalar_lea.vmem [#allocation0], 8
    %v29 = vld [vmem:[%s28] sm:$0x7]
    %vm30 = vcmask 523264
    %s31 = scalar_lea.vmem %s1, 3
    %32 = vst.msk [vmem:[%s31] sm:$0x7] %vm30, %v29
    %s33 = scalar_lea.vmem [#allocation0], 16
    %v34 = vld [vmem:[%s33] sm:$0x7]
    %vm35 = vcmask 523264
    %s36 = scalar_lea.vmem %s1, 6
    %37 = vst.msk [vmem:[%s36] sm:$0x7] %vm35, %v34
    %s38 = scalar_lea.vmem [#allocation0], 24
    %v39 = vld [vmem:[%s38] sm:$0x7]
    %vm40 = vcmask 523264
    %s41 = scalar_lea.vmem %s1, 9
    %42 = vst.msk [vmem:[%s41] sm:$0x7] %vm40, %v39
    %s43 = scalar_lea.vmem [#allocation0], 32
    %v44 = vld [vmem:[%s43] sm:$0x7]
    %vm45 = vcmask 523264
    %s46 = scalar_lea.vmem %s1, 12
    %47 = vst.msk [vmem:[%s46] sm:$0x7] %vm45, %v44

// kernel: tile.8
$region0: #{tile.8}
  #allocation0 [shape = 's32[1]{0}', space=sflag, size = 0x4, scoped, tag = 'scoped memory for tile.8']
  %s0 = inlined_call_operand.vmem [shape: f32[64], index: 0, kind: input, shape index: {}]
  %s1 = inlined_call_operand.vmem [shape: f32[5,64], index: 1, kind: output, shape index: {}]
  // Predicated region
  $region2: #{tile.8} parent=0 // pred_check
    _
  $region3: #{tile.8} parent=0 // pred_check_branch
    %3 = sbr.rel (0) target = $region5
  $region4: #{tile.8} parent=0 // pred_region
    _
  $region5: #{tile.8} parent=0 // pred_fallthru
    _
  %v4 = vld [vmem:[%s0] ss:$0 sm:$0xff]
  %5 = vst [vmem:[%s1] sm:$0xff] %v4

// kernel: tile.9
$region0: #{tile.9}
  %s0 = inlined_call_operand.vmem [shape: f32[5,64], index: 0, kind: input, shape index: {}]
  %s1 = inlined_call_operand.vmem [shape: f32[1,320], index: 1, kind: output, shape index: {}]
  $region1: #{tile.9} parent=0
    #allocation0 [shape = 'u8[12288]{0}', space=vmem, size = 0x3000, scoped, tag = 'scoped mem for output reshape']
    %v2 = vld [vmem:[%s0] ss:$2 sm:$0x7]
    %vm3 = vcmask 523264
    %4 = vst.msk [vmem:[#allocation0] ss:$8 sm:$0x7] %vm3, %v2
    %s5 = scalar_lea.vmem %s0, 1
    %s6 = smov 3
    %v7 = vld [vmem:[%s5] ss:$2 sm:%s6]
    %8 = vrot.lane.b32.xlu0 %v7, 64
    %v9 = vpop.permute.xlu0 %8
    %vm10 = vcmask 1048064
    %11 = vst.msk [vmem:[#allocation0] ss:$8 sm:$0x3] %vm10, %v9
    %s13 = sshllo.u32 0, 1
    %v15 = vld [vmem:[#allocation0] sm:%s13]
    %s16 = sshllo.u32 0, 1
    %17 = vst [vmem:[%s1] sm:%s16] %v15
    %s18 = scalar_lea.vmem [#allocation0], 8
    %v19 = vld [vmem:[%s18] sm:%s13]
    %s20 = sshllo.u32 0, 1
    %s21 = scalar_lea.vmem %s1, 1
    %22 = vst [vmem:[%s21] sm:%s20] %v19
    %s23 = scalar_lea.vmem [#allocation0], 16
    %v24 = vld [vmem:[%s23] sm:%s13]
    %s25 = sshllo.u32 0, 1
    %s26 = smul.addr 1, 2
    %s27 = scalar_lea.vmem %s1, %s26
    %28 = vst [vmem:[%s27] sm:%s25] %v24

// kernel: meshcnn_forward.1
$region0: #{meshcnn_forward.1}
  #allocation0 [shape = 'u32[]', space=smem, size = 0x4, offset = 0x4, fixed_abs, tag = 'smem constant byte address 0x4 - core index']
  #allocation1 [shape = 'u32[144,128]{1,0:T(1,128)}', space=vmem, size = 0x12000, scoped, tag = 'internal scratch']
  %s0 = inlined_call_operand.vmem [shape: f32[5,8,75], index: 0, kind: input, shape index: {}]
  %s1 = inlined_call_operand.vmem [shape: f32[75,320], index: 1, kind: input, shape index: {}]
  %s2 = inlined_call_operand.vmem [shape: f32[1,320], index: 2, kind: input, shape index: {}]
  %s3 = inlined_call_operand.vmem [shape: f32[320,128], index: 3, kind: input, shape index: {}]
  %s4 = inlined_call_operand.vmem [shape: f32[1,128], index: 4, kind: input, shape index: {}]
  %s5 = inlined_call_operand.vmem [shape: f32[128,64], index: 5, kind: input, shape index: {}]
  %s6 = inlined_call_operand.vmem [shape: f32[1,64], index: 6, kind: input, shape index: {}]
  %s7 = inlined_call_operand.vmem [shape: f32[64,256], index: 7, kind: input, shape index: {}]
  %s8 = inlined_call_operand.vmem [shape: f32[1,256], index: 8, kind: input, shape index: {}]
  %s9 = inlined_call_operand.vmem [shape: f32[256,128], index: 9, kind: input, shape index: {}]
  %s10 = inlined_call_operand.vmem [shape: f32[1,128], index: 10, kind: input, shape index: {}]
  %s11 = inlined_call_operand.vmem [shape: f32[8,128], index: 11, kind: output, shape index: {}]
  %s12 = sld [smem:[#allocation0]]
  $region54: #{meshcnn_forward.1} parent=0
    _
  %s14 = ssub.s32 1, %s12
  %s15 = scalar_select 0, %s14, %s12
  // Predicated region
  $region2: #{meshcnn_forward.1} parent=0 // pred_check
    _
  $region3: #{meshcnn_forward.1} parent=0 // pred_check_branch
    %17 = sbr.rel (0) target = $region5
  $region4: #{meshcnn_forward.1} parent=0 // pred_region
    _
  $region5: #{meshcnn_forward.1} parent=0 // pred_fallthru
    _
  // Predicated region
  $region6: #{meshcnn_forward.1} parent=0 // pred_check
    _
  $region7: #{meshcnn_forward.1} parent=0 // pred_check_branch
    %19 = sbr.rel (0) target = $region9
  $region8: #{meshcnn_forward.1} parent=0 // pred_region
    _
  $region9: #{meshcnn_forward.1} parent=0 // pred_fallthru
    _
  // Predicated region
  $region10: #{meshcnn_forward.1} parent=0 // pred_check
    _
  $region11: #{meshcnn_forward.1} parent=0 // pred_check_branch
    %21 = sbr.rel (0) target = $region13
  $region12: #{meshcnn_forward.1} parent=0 // pred_region
    _
  $region13: #{meshcnn_forward.1} parent=0 // pred_fallthru
    _
  // Predicated region
  $region14: #{meshcnn_forward.1} parent=0 // pred_check
    _
  $region15: #{meshcnn_forward.1} parent=0 // pred_check_branch
    %23 = sbr.rel (0) target = $region17
  $region16: #{meshcnn_forward.1} parent=0 // pred_region
    _
  $region17: #{meshcnn_forward.1} parent=0 // pred_fallthru
    _
  // Predicated region
  $region18: #{meshcnn_forward.1} parent=0 // pred_check
    _
  $region19: #{meshcnn_forward.1} parent=0 // pred_check_branch
    %25 = sbr.rel (0) target = $region21
  $region20: #{meshcnn_forward.1} parent=0 // pred_region
    _
  $region21: #{meshcnn_forward.1} parent=0 // pred_fallthru
    _
  // Predicated region
  $region22: #{meshcnn_forward.1} parent=0 // pred_check
    _
  $region23: #{meshcnn_forward.1} parent=0 // pred_check_branch
    %27 = sbr.rel (0) target = $region25
  $region24: #{meshcnn_forward.1} parent=0 // pred_region
    _
  $region25: #{meshcnn_forward.1} parent=0 // pred_fallthru
    _
  // Predicated region
  $region26: #{meshcnn_forward.1} parent=0 // pred_check
    _
  $region27: #{meshcnn_forward.1} parent=0 // pred_check_branch
    %29 = sbr.rel (0) target = $region29
  $region28: #{meshcnn_forward.1} parent=0 // pred_region
    _
  $region29: #{meshcnn_forward.1} parent=0 // pred_fallthru
    _
  // Predicated region
  $region30: #{meshcnn_forward.1} parent=0 // pred_check
    _
  $region31: #{meshcnn_forward.1} parent=0 // pred_check_branch
    %31 = sbr.rel (0) target = $region33
  $region32: #{meshcnn_forward.1} parent=0 // pred_region
    _
  $region33: #{meshcnn_forward.1} parent=0 // pred_fallthru
    _
  // Predicated region
  $region34: #{meshcnn_forward.1} parent=0 // pred_check
    _
  $region35: #{meshcnn_forward.1} parent=0 // pred_check_branch
    %33 = sbr.rel (0) target = $region37
  $region36: #{meshcnn_forward.1} parent=0 // pred_region
    _
  $region37: #{meshcnn_forward.1} parent=0 // pred_fallthru
    _
  // Predicated region
  $region38: #{meshcnn_forward.1} parent=0 // pred_check
    _
  $region39: #{meshcnn_forward.1} parent=0 // pred_check_branch
    %35 = sbr.rel (0) target = $region41
  $region40: #{meshcnn_forward.1} parent=0 // pred_region
    _
  $region41: #{meshcnn_forward.1} parent=0 // pred_fallthru
    _
  // Predicated region
  $region42: #{meshcnn_forward.1} parent=0 // pred_check
    _
  $region43: #{meshcnn_forward.1} parent=0 // pred_check_branch
    %37 = sbr.rel (0) target = $region45
  $region44: #{meshcnn_forward.1} parent=0 // pred_region
    _
  $region45: #{meshcnn_forward.1} parent=0 // pred_fallthru
    _
  %v38 = vld [vmem:[%s2] sm:$0x7]
  %v40 = vlaneseq
  %v41 = vshrl.u32 %v40, 7
  %v42 = vsub.s32 0, %v41
  %v43 = vrot.slane %v38, %v42
  %v44 = vlaneseq
  %v45 = vshrl.u32 %v44, 7
  %v46 = vsub.s32 1, %v45
  %v47 = vrot.slane %v38, %v46
  %v48 = vlaneseq
  %v49 = vshrl.u32 %v48, 7
  %v50 = vsub.s32 2, %v49
  %v51 = vrot.slane %v38, %v50
  %v55 = vld [vmem:[%s0] sm:$0xff]
  %v56 = vld [vmem:[%s1] sm:$0xff]
  %v57 = vld [vmem:[%s1 + $0x8] sm:$0xff]
  %v58 = vld [vmem:[%s1 + $0x10] sm:$0xff]
  %v59 = vld [vmem:[%s1 + $0x18] sm:$0xff]
  %v60 = vld [vmem:[%s1 + $0x20] sm:$0xff]
  %v61 = vld [vmem:[%s1 + $0x28] sm:$0xff]
  %v62 = vld [vmem:[%s1 + $0x30] sm:$0xff]
  %v63 = vld [vmem:[%s1 + $0x38] sm:$0xff]
  %v64 = vld [vmem:[%s1 + $0x40] sm:$0xff]
  %v65 = vld [vmem:[%s1 + $0x48] sm:$0xff]
  %v66 = vld [vmem:[%s1 + $0x50] sm:$0xff]
  %v67 = vld [vmem:[%s1 + $0x58] sm:$0xff]
  %v68 = vld [vmem:[%s1 + $0x60] sm:$0xff]
  %v69 = vld [vmem:[%s1 + $0x68] sm:$0xff]
  %v70 = vld [vmem:[%s1 + $0x70] sm:$0xff]
  %v71 = vld [vmem:[%s1 + $0x78] sm:$0xff]
  %v72 = vld [vmem:[%s1 + $0x80] sm:$0xff]
  %v73 = vld [vmem:[%s1 + $0x88] sm:$0xff]
  %v74 = vld [vmem:[%s1 + $0x90] sm:$0xff]
  %v75 = vld [vmem:[%s1 + $0x98] sm:$0xff]
  %v76 = vld [vmem:[%s1 + $0xa0] sm:$0xff]
  %v77 = vld [vmem:[%s1 + $0xa8] sm:$0xff]
  %v78 = vld [vmem:[%s1 + $0xb0] sm:$0xff]
  %v79 = vld [vmem:[%s1 + $0xb8] sm:$0xff]
  %v80 = vld [vmem:[%s1 + $0xc0] sm:$0xff]
  %v81 = vld [vmem:[%s1 + $0xc8] sm:$0xff]
  %v82 = vld [vmem:[%s1 + $0xd0] sm:$0xff]
  %v83 = vld [vmem:[%s1 + $0xd8] sm:$0x7]
  %v84 = vld [vmem:[%s1 + $0xe0] sm:$0x7]
  %v85 = vld [vmem:[%s1 + $0xe8] sm:$0x7]
  %vm86 = vcmask 613376
  %v88 = vsel %vm86, %v55, 0
  %vm90 = vcmask 1042432
  %v92 = vsel %vm90, %v83, 0
  %v95 = vsel %vm90, %v84, 0
  %v98 = vsel %vm90, %v85, 0
  %100 = vmatprep.subr.mxu0 %v57
  %101 = vmatpush1.msra.mxu0 %v56
  %102 = vmatprep.subr.mxu0 %v60
  %103 = vmatpush1.msra.mxu0 %v59
  %104 = vmatprep.subr.mxu0 %v63
  %105 = vmatpush1.msra.mxu0 %v62
  %106 = vmatprep.subr.mxu0 %v66
  %107 = vmatpush1.msra.mxu0 %v65
  %108 = vmatprep.subr.mxu0 %v69
  %109 = vmatpush1.msra.mxu0 %v68
  %110 = vmatprep.subr.mxu0 %v72
  %111 = vmatpush1.msra.mxu0 %v71
  %112 = vmatprep.subr.mxu0 %v75
  %113 = vmatpush1.msra.mxu0 %v74
  %114 = vmatprep.subr.mxu0 %v78
  %115 = vmatpush1.msra.mxu0 %v77
  %116 = vmatprep.subr.mxu0 %v81
  %117 = vmatpush1.msra.mxu0 %v80
  %118 = vmatprep.subr.mxu0 %v95
  %119 = vmatpush1.msra.mxu0 %v92
  %120 = vmatprep.subr.mxu0 0.0
  %121 = vmatpush1.msra.mxu0 0.0
  %122 = vmatprep.subr.mxu0 0.0
  %123 = vmatpush1.msra.mxu0 0.0
  %124 = vmatprep.subr.mxu0 0.0
  %125 = vmatpush1.msra.mxu0 0.0
  %126 = vmatprep.subr.mxu0 0.0
  %127 = vmatpush1.msra.mxu0 0.0
  %128 = vmatprep.subr.mxu0 0.0
  %129 = vmatpush1.msra.mxu0 0.0
  %130 = vmatprep.subr.mxu0 0.0
  %131 = vmatpush1.msra.mxu0 0.0
  %132 = vmatprep.subr.mxu0 0.0
  %133 = vmatpush1.msra.mxu0 0.0
  %134 = vmatprep.subr.mxu0 0.0
  %135 = vmatpush1.msra.mxu0 0.0
  %136 = vmatprep.subr.mxu0 0.0
  %137 = vmatpush1.msra.mxu0 0.0
  %138 = vmatprep.subr.mxu0 0.0
  %139 = vmatpush1.msra.mxu0 0.0
  %140 = vmatprep.subr.mxu0 0.0
  %141 = vmatpush1.msra.mxu0 0.0
  %142 = vmatprep.subr.mxu0 0.0
  %143 = vmatpush1.msra.mxu0 0.0
  %144 = vmatprep.subr.mxu0 0.0
  %145 = vmatpush1.msra.mxu0 0.0
  %146 = vmatprep.subr.mxu0 0.0
  %147 = vmatpush1.msra.mxu0 0.0
  %148 = vmatprep.subr.mxu0 0.0
  %149 = vmatpush1.msra.mxu0 0.0
  %150 = vmatprep.subr.mxu0 0.0
  %151 = vmatpush1.msra.mxu0 0.0
  %152 = vmatprep.subr.mxu0 0.0
  %153 = vmatpush1.msra.mxu0 0.0
  %154 = vmatprep.subr.mxu0 0.0
  %155 = vmatpush1.msra.mxu0 0.0
  %156 = vmatprep.subr.mxu0 0.0
  %157 = vmatpush1.msra.mxu0 0.0
  %158 = vmatprep.subr.mxu0 0.0
  %159 = vmatpush1.msra.mxu0 0.0
  %160 = vmatprep.subr.mxu0 0.0
  %161 = vmatpush1.msra.mxu0 0.0
  %162 = vmatprep.subr.mxu0 0.0
  %163 = vmatpush1.msra.mxu0 0.0
  %164 = vmatprep.mubr.f32.mxu0 0.0
  %165 = vmatmul.mubr.f32.gmra.mrb[0].mxu0 %v88
  %v166 = vpop.f32.mrb[0].mxu0
  %v167 = vadd.f32 %v43, %v166
  %v168 = vpop.f32.mrb[0].mxu0
  %v169 = vadd.f32 %v47, %v168
  %170 = vdwg.mxu0
  %171 = vmatprep.subr.mxu0 0.0
  %172 = vmatpush1.msra.mxu0 %v58
  %173 = vmatprep.subr.mxu0 0.0
  %174 = vmatpush1.msra.mxu0 %v61
  %175 = vmatprep.subr.mxu0 0.0
  %176 = vmatpush1.msra.mxu0 %v64
  %177 = vmatprep.subr.mxu0 0.0
  %178 = vmatpush1.msra.mxu0 %v67
  %179 = vmatprep.subr.mxu0 0.0
  %180 = vmatpush1.msra.mxu0 %v70
  %181 = vmatprep.subr.mxu0 0.0
  %182 = vmatpush1.msra.mxu0 %v73
  %183 = vmatprep.subr.mxu0 0.0
  %184 = vmatpush1.msra.mxu0 %v76
  %185 = vmatprep.subr.mxu0 0.0
  %186 = vmatpush1.msra.mxu0 %v79
  %187 = vmatprep.subr.mxu0 0.0
  %188 = vmatpush1.msra.mxu0 %v82
  %189 = vmatprep.subr.mxu0 0.0
  %190 = vmatpush1.msra.mxu0 %v98
  %191 = vmatprep.subr.mxu0 0.0
  %192 = vmatpush1.msra.mxu0 0.0
  %193 = vmatprep.subr.mxu0 0.0
  %194 = vmatpush1.msra.mxu0 0.0
  %195 = vmatprep.subr.mxu0 0.0
  %196 = vmatpush1.msra.mxu0 0.0
  %197 = vmatprep.subr.mxu0 0.0
  %198 = vmatpush1.msra.mxu0 0.0
  %199 = vmatprep.subr.mxu0 0.0
  %200 = vmatpush1.msra.mxu0 0.0
  %201 = vmatprep.subr.mxu0 0.0
  %202 = vmatpush1.msra.mxu0 0.0
  %203 = vmatprep.subr.mxu0 0.0
  %204 = vmatpush1.msra.mxu0 0.0
  %205 = vmatprep.subr.mxu0 0.0
  %206 = vmatpush1.msra.mxu0 0.0
  %207 = vmatprep.subr.mxu0 0.0
  %208 = vmatpush1.msra.mxu0 0.0
  %209 = vmatprep.subr.mxu0 0.0
  %210 = vmatpush1.msra.mxu0 0.0
  %211 = vmatprep.subr.mxu0 0.0
  %212 = vmatpush1.msra.mxu0 0.0
  %213 = vmatprep.subr.mxu0 0.0
  %214 = vmatpush1.msra.mxu0 0.0
  %215 = vmatprep.subr.mxu0 0.0
  %216 = vmatpush1.msra.mxu0 0.0
  %217 = vmatprep.subr.mxu0 0.0
  %218 = vmatpush1.msra.mxu0 0.0
  %219 = vmatprep.subr.mxu0 0.0
  %220 = vmatpush1.msra.mxu0 0.0
  %221 = vmatprep.subr.mxu0 0.0
  %222 = vmatpush1.msra.mxu0 0.0
  %223 = vmatprep.subr.mxu0 0.0
  %224 = vmatpush1.msra.mxu0 0.0
  %225 = vmatprep.subr.mxu0 0.0
  %226 = vmatpush1.msra.mxu0 0.0
  %227 = vmatprep.subr.mxu0 0.0
  %228 = vmatpush1.msra.mxu0 0.0
  %229 = vmatprep.subr.mxu0 0.0
  %230 = vmatpush1.msra.mxu0 0.0
  %231 = vmatprep.subr.mxu0 0.0
  %232 = vmatpush1.msra.mxu0 0.0
  %233 = vmatprep.subr.mxu0 0.0
  %234 = vmatpush1.msra.mxu0 0.0
  %235 = vmatprep.mubr.f32.mxu0 0.0
  %236 = vmatmul.mubr.f32.gmra.mrb[0].mxu0 %v88
  %v237 = vpop.f32.mrb[0].mxu0
  %v238 = vadd.f32 %v51, %v237
  %v239 = vpop.f32.mrb[0].mxu0
  %240 = vdwg.mxu0
  %v241 = vmax.f32 %v167, 0.0
  %v242 = vmax.f32 %v169, 0.0
  %v243 = vmax.f32 %v238, 0.0
  %s244 = scalar_lea.vmem %s0, 8
  %v245 = vld [vmem:[%s244] sm:$0xff]
  %v247 = vsel %vm86, %v245, 0
  %249 = vmatprep.subr.mxu0 %v57
  %250 = vmatpush1.msra.mxu0 %v56
  %251 = vmatprep.subr.mxu0 %v60
  %252 = vmatpush1.msra.mxu0 %v59
  %253 = vmatprep.subr.mxu0 %v63
  %254 = vmatpush1.msra.mxu0 %v62
  %255 = vmatprep.subr.mxu0 %v66
  %256 = vmatpush1.msra.mxu0 %v65
  %257 = vmatprep.subr.mxu0 %v69
  %258 = vmatpush1.msra.mxu0 %v68
  %259 = vmatprep.subr.mxu0 %v72
  %260 = vmatpush1.msra.mxu0 %v71
  %261 = vmatprep.subr.mxu0 %v75
  %262 = vmatpush1.msra.mxu0 %v74
  %263 = vmatprep.subr.mxu0 %v78
  %264 = vmatpush1.msra.mxu0 %v77
  %265 = vmatprep.subr.mxu0 %v81
  %266 = vmatpush1.msra.mxu0 %v80
  %267 = vmatprep.subr.mxu0 %v95
  %268 = vmatpush1.msra.mxu0 %v92
  %269 = vmatprep.subr.mxu0 0.0
  %270 = vmatpush1.msra.mxu0 0.0
  %271 = vmatprep.subr.mxu0 0.0
  %272 = vmatpush1.msra.mxu0 0.0
  %273 = vmatprep.subr.mxu0 0.0
  %274 = vmatpush1.msra.mxu0 0.0
  %275 = vmatprep.subr.mxu0 0.0
  %276 = vmatpush1.msra.mxu0 0.0
  %277 = vmatprep.subr.mxu0 0.0
  %278 = vmatpush1.msra.mxu0 0.0
  %279 = vmatprep.subr.mxu0 0.0
  %280 = vmatpush1.msra.mxu0 0.0
  %281 = vmatprep.subr.mxu0 0.0
  %282 = vmatpush1.msra.mxu0 0.0
  %283 = vmatprep.subr.mxu0 0.0
  %284 = vmatpush1.msra.mxu0 0.0
  %285 = vmatprep.subr.mxu0 0.0
  %286 = vmatpush1.msra.mxu0 0.0
  %287 = vmatprep.subr.mxu0 0.0
  %288 = vmatpush1.msra.mxu0 0.0
  %289 = vmatprep.subr.mxu0 0.0
  %290 = vmatpush1.msra.mxu0 0.0
  %291 = vmatprep.subr.mxu0 0.0
  %292 = vmatpush1.msra.mxu0 0.0
  %293 = vmatprep.subr.mxu0 0.0
  %294 = vmatpush1.msra.mxu0 0.0
  %295 = vmatprep.subr.mxu0 0.0
  %296 = vmatpush1.msra.mxu0 0.0
  %297 = vmatprep.subr.mxu0 0.0
  %298 = vmatpush1.msra.mxu0 0.0
  %299 = vmatprep.subr.mxu0 0.0
  %300 = vmatpush1.msra.mxu0 0.0
  %301 = vmatprep.subr.mxu0 0.0
  %302 = vmatpush1.msra.mxu0 0.0
  %303 = vmatprep.subr.mxu0 0.0
  %304 = vmatpush1.msra.mxu0 0.0
  %305 = vmatprep.subr.mxu0 0.0
  %306 = vmatpush1.msra.mxu0 0.0
  %307 = vmatprep.subr.mxu0 0.0
  %308 = vmatpush1.msra.mxu0 0.0
  %309 = vmatprep.subr.mxu0 0.0
  %310 = vmatpush1.msra.mxu0 0.0
  %311 = vmatprep.subr.mxu0 0.0
  %312 = vmatpush1.msra.mxu0 0.0
  %313 = vmatprep.mubr.f32.mxu0 0.0
  %314 = vmatmul.mubr.f32.gmra.mrb[0].mxu0 %v247
  %v315 = vpop.f32.mrb[0].mxu0
  %v316 = vadd.f32 %v43, %v315
  %v317 = vpop.f32.mrb[0].mxu0
  %v318 = vadd.f32 %v47, %v317
  %319 = vdwg.mxu0
  %320 = vmatprep.subr.mxu0 0.0
  %321 = vmatpush1.msra.mxu0 %v58
  %322 = vmatprep.subr.mxu0 0.0
  %323 = vmatpush1.msra.mxu0 %v61
  %324 = vmatprep.subr.mxu0 0.0
  %325 = vmatpush1.msra.mxu0 %v64
  %326 = vmatprep.subr.mxu0 0.0
  %327 = vmatpush1.msra.mxu0 %v67
  %328 = vmatprep.subr.mxu0 0.0
  %329 = vmatpush1.msra.mxu0 %v70
  %330 = vmatprep.subr.mxu0 0.0
  %331 = vmatpush1.msra.mxu0 %v73
  %332 = vmatprep.subr.mxu0 0.0
  %333 = vmatpush1.msra.mxu0 %v76
  %334 = vmatprep.subr.mxu0 0.0
  %335 = vmatpush1.msra.mxu0 %v79
  %336 = vmatprep.subr.mxu0 0.0
  %337 = vmatpush1.msra.mxu0 %v82
  %338 = vmatprep.subr.mxu0 0.0
  %339 = vmatpush1.msra.mxu0 %v98
  %340 = vmatprep.subr.mxu0 0.0
  %341 = vmatpush1.msra.mxu0 0.0
  %342 = vmatprep.subr.mxu0 0.0
  %343 = vmatpush1.msra.mxu0 0.0
  %344 = vmatprep.subr.mxu0 0.0
  %345 = vmatpush1.msra.mxu0 0.0
  %346 = vmatprep.subr.mxu0 0.0
  %347 = vmatpush1.msra.mxu0 0.0
  %348 = vmatprep.subr.mxu0 0.0
  %349 = vmatpush1.msra.mxu0 0.0
  %350 = vmatprep.subr.mxu0 0.0
  %351 = vmatpush1.msra.mxu0 0.0
  %352 = vmatprep.subr.mxu0 0.0
  %353 = vmatpush1.msra.mxu0 0.0
  %354 = vmatprep.subr.mxu0 0.0
  %355 = vmatpush1.msra.mxu0 0.0
  %356 = vmatprep.subr.mxu0 0.0
  %357 = vmatpush1.msra.mxu0 0.0
  %358 = vmatprep.subr.mxu0 0.0
  %359 = vmatpush1.msra.mxu0 0.0
  %360 = vmatprep.subr.mxu0 0.0
  %361 = vmatpush1.msra.mxu0 0.0
  %362 = vmatprep.subr.mxu0 0.0
  %363 = vmatpush1.msra.mxu0 0.0
  %364 = vmatprep.subr.mxu0 0.0
  %365 = vmatpush1.msra.mxu0 0.0
  %366 = vmatprep.subr.mxu0 0.0
  %367 = vmatpush1.msra.mxu0 0.0
  %368 = vmatprep.subr.mxu0 0.0
  %369 = vmatpush1.msra.mxu0 0.0
  %370 = vmatprep.subr.mxu0 0.0
  %371 = vmatpush1.msra.mxu0 0.0
  %372 = vmatprep.subr.mxu0 0.0
  %373 = vmatpush1.msra.mxu0 0.0
  %374 = vmatprep.subr.mxu0 0.0
  %375 = vmatpush1.msra.mxu0 0.0
  %376 = vmatprep.subr.mxu0 0.0
  %377 = vmatpush1.msra.mxu0 0.0
  %378 = vmatprep.subr.mxu0 0.0
  %379 = vmatpush1.msra.mxu0 0.0
  %380 = vmatprep.subr.mxu0 0.0
  %381 = vmatpush1.msra.mxu0 0.0
  %382 = vmatprep.subr.mxu0 0.0
  %383 = vmatpush1.msra.mxu0 0.0
  %384 = vmatprep.mubr.f32.mxu0 0.0
  %385 = vmatmul.mubr.f32.gmra.mrb[0].mxu0 %v247
  %v386 = vpop.f32.mrb[0].mxu0
  %v387 = vadd.f32 %v51, %v386
  %v388 = vpop.f32.mrb[0].mxu0
  %389 = vdwg.mxu0
  %v390 = vmax.f32 %v316, 0.0
  %v391 = vmax.f32 %v318, 0.0
  %v392 = vmax.f32 %v387, 0.0
  %s393 = scalar_lea.vmem %s0, 16
  %v394 = vld [vmem:[%s393] sm:$0xff]
  %v396 = vsel %vm86, %v394, 0
  %398 = vmatprep.subr.mxu0 %v57
  %399 = vmatpush1.msra.mxu0 %v56
  %400 = vmatprep.subr.mxu0 %v60
  %401 = vmatpush1.msra.mxu0 %v59
  %402 = vmatprep.subr.mxu0 %v63
  %403 = vmatpush1.msra.mxu0 %v62
  %404 = vmatprep.subr.mxu0 %v66
  %405 = vmatpush1.msra.mxu0 %v65
  %406 = vmatprep.subr.mxu0 %v69
  %407 = vmatpush1.msra.mxu0 %v68
  %408 = vmatprep.subr.mxu0 %v72
  %409 = vmatpush1.msra.mxu0 %v71
  %410 = vmatprep.subr.mxu0 %v75
  %411 = vmatpush1.msra.mxu0 %v74
  %412 = vmatprep.subr.mxu0 %v78
  %413 = vmatpush1.msra.mxu0 %v77
  %414 = vmatprep.subr.mxu0 %v81
  %415 = vmatpush1.msra.mxu0 %v80
  %416 = vmatprep.subr.mxu0 %v95
  %417 = vmatpush1.msra.mxu0 %v92
  %418 = vmatprep.subr.mxu0 0.0
  %419 = vmatpush1.msra.mxu0 0.0
  %420 = vmatprep.subr.mxu0 0.0
  %421 = vmatpush1.msra.mxu0 0.0
  %422 = vmatprep.subr.mxu0 0.0
  %423 = vmatpush1.msra.mxu0 0.0
  %424 = vmatprep.subr.mxu0 0.0
  %425 = vmatpush1.msra.mxu0 0.0
  %426 = vmatprep.subr.mxu0 0.0
  %427 = vmatpush1.msra.mxu0 0.0
  %428 = vmatprep.subr.mxu0 0.0
  %429 = vmatpush1.msra.mxu0 0.0
  %430 = vmatprep.subr.mxu0 0.0
  %431 = vmatpush1.msra.mxu0 0.0
  %432 = vmatprep.subr.mxu0 0.0
  %433 = vmatpush1.msra.mxu0 0.0
  %434 = vmatprep.subr.mxu0 0.0
  %435 = vmatpush1.msra.mxu0 0.0
  %436 = vmatprep.subr.mxu0 0.0
  %437 = vmatpush1.msra.mxu0 0.0
  %438 = vmatprep.subr.mxu0 0.0
  %439 = vmatpush1.msra.mxu0 0.0
  %440 = vmatprep.subr.mxu0 0.0
  %441 = vmatpush1.msra.mxu0 0.0
  %442 = vmatprep.subr.mxu0 0.0
  %443 = vmatpush1.msra.mxu0 0.0
  %444 = vmatprep.subr.mxu0 0.0
  %445 = vmatpush1.msra.mxu0 0.0
  %446 = vmatprep.subr.mxu0 0.0
  %447 = vmatpush1.msra.mxu0 0.0
  %448 = vmatprep.subr.mxu0 0.0
  %449 = vmatpush1.msra.mxu0 0.0
  %450 = vmatprep.subr.mxu0 0.0
  %451 = vmatpush1.msra.mxu0 0.0
  %452 = vmatprep.subr.mxu0 0.0
  %453 = vmatpush1.msra.mxu0 0.0
  %454 = vmatprep.subr.mxu0 0.0
  %455 = vmatpush1.msra.mxu0 0.0
  %456 = vmatprep.subr.mxu0 0.0
  %457 = vmatpush1.msra.mxu0 0.0
  %458 = vmatprep.subr.mxu0 0.0
  %459 = vmatpush1.msra.mxu0 0.0
  %460 = vmatprep.subr.mxu0 0.0
  %461 = vmatpush1.msra.mxu0 0.0
  %462 = vmatprep.mubr.f32.mxu0 0.0
  %463 = vmatmul.mubr.f32.gmra.mrb[0].mxu0 %v396
  %v464 = vpop.f32.mrb[0].mxu0
  %v465 = vadd.f32 %v43, %v464
  %v466 = vpop.f32.mrb[0].mxu0
  %v467 = vadd.f32 %v47, %v466
  %468 = vdwg.mxu0
  %469 = vmatprep.subr.mxu0 0.0
  %470 = vmatpush1.msra.mxu0 %v58
  %471 = vmatprep.subr.mxu0 0.0
  %472 = vmatpush1.msra.mxu0 %v61
  %473 = vmatprep.subr.mxu0 0.0
  %474 = vmatpush1.msra.mxu0 %v64
  %475 = vmatprep.subr.mxu0 0.0
  %476 = vmatpush1.msra.mxu0 %v67
  %477 = vmatprep.subr.mxu0 0.0
  %478 = vmatpush1.msra.mxu0 %v70
  %479 = vmatprep.subr.mxu0 0.0
  %480 = vmatpush1.msra.mxu0 %v73
  %481 = vmatprep.subr.mxu0 0.0
  %482 = vmatpush1.msra.mxu0 %v76
  %483 = vmatprep.subr.mxu0 0.0
  %484 = vmatpush1.msra.mxu0 %v79
  %485 = vmatprep.subr.mxu0 0.0
  %486 = vmatpush1.msra.mxu0 %v82
  %487 = vmatprep.subr.mxu0 0.0
  %488 = vmatpush1.msra.mxu0 %v98
  %489 = vmatprep.subr.mxu0 0.0
  %490 = vmatpush1.msra.mxu0 0.0
  %491 = vmatprep.subr.mxu0 0.0
  %492 = vmatpush1.msra.mxu0 0.0
  %493 = vmatprep.subr.mxu0 0.0
  %494 = vmatpush1.msra.mxu0 0.0
  %495 = vmatprep.subr.mxu0 0.0
  %496 = vmatpush1.msra.mxu0 0.0
  %497 = vmatprep.subr.mxu0 0.0
  %498 = vmatpush1.msra.mxu0 0.0
  %499 = vmatprep.subr.mxu0 0.0
  %500 = vmatpush1.msra.mxu0 0.0
  %501 = vmatprep.subr.mxu0 0.0
  %502 = vmatpush1.msra.mxu0 0.0
  %503 = vmatprep.subr.mxu0 0.0
  %504 = vmatpush1.msra.mxu0 0.0
  %505 = vmatprep.subr.mxu0 0.0
  %506 = vmatpush1.msra.mxu0 0.0
  %507 = vmatprep.subr.mxu0 0.0
  %508 = vmatpush1.msra.mxu0 0.0
  %509 = vmatprep.subr.mxu0 0.0
  %510 = vmatpush1.msra.mxu0 0.0
  %511 = vmatprep.subr.mxu0 0.0
  %512 = vmatpush1.msra.mxu0 0.0
  %513 = vmatprep.subr.mxu0 0.0
  %514 = vmatpush1.msra.mxu0 0.0
  %515 = vmatprep.subr.mxu0 0.0
  %516 = vmatpush1.msra.mxu0 0.0
  %517 = vmatprep.subr.mxu0 0.0
  %518 = vmatpush1.msra.mxu0 0.0
  %519 = vmatprep.subr.mxu0 0.0
  %520 = vmatpush1.msra.mxu0 0.0
  %521 = vmatprep.subr.mxu0 0.0
  %522 = vmatpush1.msra.mxu0 0.0
  %523 = vmatprep.subr.mxu0 0.0
  %524 = vmatpush1.msra.mxu0 0.0
  %525 = vmatprep.subr.mxu0 0.0
  %526 = vmatpush1.msra.mxu0 0.0
  %527 = vmatprep.subr.mxu0 0.0
  %528 = vmatpush1.msra.mxu0 0.0
  %529 = vmatprep.subr.mxu0 0.0
  %530 = vmatpush1.msra.mxu0 0.0
  %531 = vmatprep.subr.mxu0 0.0
  %532 = vmatpush1.msra.mxu0 0.0
  %533 = vmatprep.mubr.f32.mxu0 0.0
  %534 = vmatmul.mubr.f32.gmra.mrb[0].mxu0 %v396
  %v535 = vpop.f32.mrb[0].mxu0
  %v536 = vadd.f32 %v51, %v535
  %v537 = vpop.f32.mrb[0].mxu0
  %538 = vdwg.mxu0
  %v539 = vmax.f32 %v465, 0.0
  %v540 = vmax.f32 %v467, 0.0
  %v541 = vmax.f32 %v536, 0.0
  %s542 = scalar_lea.vmem %s0, 24
  %v543 = vld [vmem:[%s542] sm:$0xff]
  %v545 = vsel %vm86, %v543, 0
  %547 = vmatprep.subr.mxu0 %v57
  %548 = vmatpush1.msra.mxu0 %v56
  %549 = vmatprep.subr.mxu0 %v60
  %550 = vmatpush1.msra.mxu0 %v59
  %551 = vmatprep.subr.mxu0 %v63
  %552 = vmatpush1.msra.mxu0 %v62
  %553 = vmatprep.subr.mxu0 %v66
  %554 = vmatpush1.msra.mxu0 %v65
  %555 = vmatprep.subr.mxu0 %v69
  %556 = vmatpush1.msra.mxu0 %v68
  %557 = vmatprep.subr.mxu0 %v72
  %558 = vmatpush1.msra.mxu0 %v71
  %559 = vmatprep.subr.mxu0 %v75
  %560 = vmatpush1.msra.mxu0 %v74
  %561 = vmatprep.subr.mxu0 %v78
  %562 = vmatpush1.msra.mxu0 %v77
  %563 = vmatprep.subr.mxu0 %v81
  %564 = vmatpush1.msra.mxu0 %v80
  %565 = vmatprep.subr.mxu0 %v95
  %566 = vmatpush1.msra.mxu0 %v92
  %567 = vmatprep.subr.mxu0 0.0
  %568 = vmatpush1.msra.mxu0 0.0
  %569 = vmatprep.subr.mxu0 0.0
  %570 = vmatpush1.msra.mxu0 0.0
  %571 = vmatprep.subr.mxu0 0.0
  %572 = vmatpush1.msra.mxu0 0.0
  %573 = vmatprep.subr.mxu0 0.0
  %574 = vmatpush1.msra.mxu0 0.0
  %575 = vmatprep.subr.mxu0 0.0
  %576 = vmatpush1.msra.mxu0 0.0
  %577 = vmatprep.subr.mxu0 0.0
  %578 = vmatpush1.msra.mxu0 0.0
  %579 = vmatprep.subr.mxu0 0.0
  %580 = vmatpush1.msra.mxu0 0.0
  %581 = vmatprep.subr.mxu0 0.0
  %582 = vmatpush1.msra.mxu0 0.0
  %583 = vmatprep.subr.mxu0 0.0
  %584 = vmatpush1.msra.mxu0 0.0
  %585 = vmatprep.subr.mxu0 0.0
  %586 = vmatpush1.msra.mxu0 0.0
  %587 = vmatprep.subr.mxu0 0.0
  %588 = vmatpush1.msra.mxu0 0.0
  %589 = vmatprep.subr.mxu0 0.0
  %590 = vmatpush1.msra.mxu0 0.0
  %591 = vmatprep.subr.mxu0 0.0
  %592 = vmatpush1.msra.mxu0 0.0
  %593 = vmatprep.subr.mxu0 0.0
  %594 = vmatpush1.msra.mxu0 0.0
  %595 = vmatprep.subr.mxu0 0.0
  %596 = vmatpush1.msra.mxu0 0.0
  %597 = vmatprep.subr.mxu0 0.0
  %598 = vmatpush1.msra.mxu0 0.0
  %599 = vmatprep.subr.mxu0 0.0
  %600 = vmatpush1.msra.mxu0 0.0
  %601 = vmatprep.subr.mxu0 0.0
  %602 = vmatpush1.msra.mxu0 0.0
  %603 = vmatprep.subr.mxu0 0.0
  %604 = vmatpush1.msra.mxu0 0.0
  %605 = vmatprep.subr.mxu0 0.0
  %606 = vmatpush1.msra.mxu0 0.0
  %607 = vmatprep.subr.mxu0 0.0
  %608 = vmatpush1.msra.mxu0 0.0
  %609 = vmatprep.subr.mxu0 0.0
  %610 = vmatpush1.msra.mxu0 0.0
  %611 = vmatprep.mubr.f32.mxu0 0.0
  %612 = vmatmul.mubr.f32.gmra.mrb[0].mxu0 %v545
  %v613 = vpop.f32.mrb[0].mxu0
  %v614 = vadd.f32 %v43, %v613
  %v615 = vpop.f32.mrb[0].mxu0
  %v616 = vadd.f32 %v47, %v615
  %617 = vdwg.mxu0
  %618 = vmatprep.subr.mxu0 0.0
  %619 = vmatpush1.msra.mxu0 %v58
  %620 = vmatprep.subr.mxu0 0.0
  %621 = vmatpush1.msra.mxu0 %v61
  %622 = vmatprep.subr.mxu0 0.0
  %623 = vmatpush1.msra.mxu0 %v64
  %624 = vmatprep.subr.mxu0 0.0
  %625 = vmatpush1.msra.mxu0 %v67
  %626 = vmatprep.subr.mxu0 0.0
  %627 = vmatpush1.msra.mxu0 %v70
  %628 = vmatprep.subr.mxu0 0.0
  %629 = vmatpush1.msra.mxu0 %v73
  %630 = vmatprep.subr.mxu0 0.0
  %631 = vmatpush1.msra.mxu0 %v76
  %632 = vmatprep.subr.mxu0 0.0
  %633 = vmatpush1.msra.mxu0 %v79
  %634 = vmatprep.subr.mxu0 0.0
  %635 = vmatpush1.msra.mxu0 %v82
  %636 = vmatprep.subr.mxu0 0.0
  %637 = vmatpush1.msra.mxu0 %v98
  %638 = vmatprep.subr.mxu0 0.0
  %639 = vmatpush1.msra.mxu0 0.0
  %640 = vmatprep.subr.mxu0 0.0
  %641 = vmatpush1.msra.mxu0 0.0
  %642 = vmatprep.subr.mxu0 0.0
  %643 = vmatpush1.msra.mxu0 0.0
  %644 = vmatprep.subr.mxu0 0.0
  %645 = vmatpush1.msra.mxu0 0.0
  %646 = vmatprep.subr.mxu0 0.0
  %647 = vmatpush1.msra.mxu0 0.0
  %648 = vmatprep.subr.mxu0 0.0
  %649 = vmatpush1.msra.mxu0 0.0
  %650 = vmatprep.subr.mxu0 0.0
  %651 = vmatpush1.msra.mxu0 0.0
  %652 = vmatprep.subr.mxu0 0.0
  %653 = vmatpush1.msra.mxu0 0.0
  %654 = vmatprep.subr.mxu0 0.0
  %655 = vmatpush1.msra.mxu0 0.0
  %656 = vmatprep.subr.mxu0 0.0
  %657 = vmatpush1.msra.mxu0 0.0
  %658 = vmatprep.subr.mxu0 0.0
  %659 = vmatpush1.msra.mxu0 0.0
  %660 = vmatprep.subr.mxu0 0.0
  %661 = vmatpush1.msra.mxu0 0.0
  %662 = vmatprep.subr.mxu0 0.0
  %663 = vmatpush1.msra.mxu0 0.0
  %664 = vmatprep.subr.mxu0 0.0
  %665 = vmatpush1.msra.mxu0 0.0
  %666 = vmatprep.subr.mxu0 0.0
  %667 = vmatpush1.msra.mxu0 0.0
  %668 = vmatprep.subr.mxu0 0.0
  %669 = vmatpush1.msra.mxu0 0.0
  %670 = vmatprep.subr.mxu0 0.0
  %671 = vmatpush1.msra.mxu0 0.0
  %672 = vmatprep.subr.mxu0 0.0
  %673 = vmatpush1.msra.mxu0 0.0
  %674 = vmatprep.subr.mxu0 0.0
  %675 = vmatpush1.msra.mxu0 0.0
  %676 = vmatprep.subr.mxu0 0.0
  %677 = vmatpush1.msra.mxu0 0.0
  %678 = vmatprep.subr.mxu0 0.0
  %679 = vmatpush1.msra.mxu0 0.0
  %680 = vmatprep.subr.mxu0 0.0
  %681 = vmatpush1.msra.mxu0 0.0
  %682 = vmatprep.mubr.f32.mxu0 0.0
  %683 = vmatmul.mubr.f32.gmra.mrb[0].mxu0 %v545
  %v684 = vpop.f32.mrb[0].mxu0
  %v685 = vadd.f32 %v51, %v684
  %v686 = vpop.f32.mrb[0].mxu0
  %687 = vdwg.mxu0
  %v688 = vmax.f32 %v614, 0.0
  %v689 = vmax.f32 %v616, 0.0
  %v690 = vmax.f32 %v685, 0.0
  %s691 = scalar_lea.vmem %s0, 32
  %v692 = vld [vmem:[%s691] sm:$0xff]
  %v694 = vsel %vm86, %v692, 0
  %696 = vmatprep.subr.mxu0 %v57
  %697 = vmatpush1.msra.mxu0 %v56
  %698 = vmatprep.subr.mxu0 %v60
  %699 = vmatpush1.msra.mxu0 %v59
  %700 = vmatprep.subr.mxu0 %v63
  %701 = vmatpush1.msra.mxu0 %v62
  %702 = vmatprep.subr.mxu0 %v66
  %703 = vmatpush1.msra.mxu0 %v65
  %704 = vmatprep.subr.mxu0 %v69
  %705 = vmatpush1.msra.mxu0 %v68
  %706 = vmatprep.subr.mxu0 %v72
  %707 = vmatpush1.msra.mxu0 %v71
  %708 = vmatprep.subr.mxu0 %v75
  %709 = vmatpush1.msra.mxu0 %v74
  %710 = vmatprep.subr.mxu0 %v78
  %711 = vmatpush1.msra.mxu0 %v77
  %712 = vmatprep.subr.mxu0 %v81
  %713 = vmatpush1.msra.mxu0 %v80
  %714 = vmatprep.subr.mxu0 %v95
  %715 = vmatpush1.msra.mxu0 %v92
  %716 = vmatprep.subr.mxu0 0.0
  %717 = vmatpush1.msra.mxu0 0.0
  %718 = vmatprep.subr.mxu0 0.0
  %719 = vmatpush1.msra.mxu0 0.0
  %720 = vmatprep.subr.mxu0 0.0
  %721 = vmatpush1.msra.mxu0 0.0
  %722 = vmatprep.subr.mxu0 0.0
  %723 = vmatpush1.msra.mxu0 0.0
  %724 = vmatprep.subr.mxu0 0.0
  %725 = vmatpush1.msra.mxu0 0.0
  %726 = vmatprep.subr.mxu0 0.0
  %727 = vmatpush1.msra.mxu0 0.0
  %728 = vmatprep.subr.mxu0 0.0
  %729 = vmatpush1.msra.mxu0 0.0
  %730 = vmatprep.subr.mxu0 0.0
  %731 = vmatpush1.msra.mxu0 0.0
  %732 = vmatprep.subr.mxu0 0.0
  %733 = vmatpush1.msra.mxu0 0.0
  %734 = vmatprep.subr.mxu0 0.0
  %735 = vmatpush1.msra.mxu0 0.0
  %736 = vmatprep.subr.mxu0 0.0
  %737 = vmatpush1.msra.mxu0 0.0
  %738 = vmatprep.subr.mxu0 0.0
  %739 = vmatpush1.msra.mxu0 0.0
  %740 = vmatprep.subr.mxu0 0.0
  %741 = vmatpush1.msra.mxu0 0.0
  %742 = vmatprep.subr.mxu0 0.0
  %743 = vmatpush1.msra.mxu0 0.0
  %744 = vmatprep.subr.mxu0 0.0
  %745 = vmatpush1.msra.mxu0 0.0
  %746 = vmatprep.subr.mxu0 0.0
  %747 = vmatpush1.msra.mxu0 0.0
  %748 = vmatprep.subr.mxu0 0.0
  %749 = vmatpush1.msra.mxu0 0.0
  %750 = vmatprep.subr.mxu0 0.0
  %751 = vmatpush1.msra.mxu0 0.0
  %752 = vmatprep.subr.mxu0 0.0
  %753 = vmatpush1.msra.mxu0 0.0
  %754 = vmatprep.subr.mxu0 0.0
  %755 = vmatpush1.msra.mxu0 0.0
  %756 = vmatprep.subr.mxu0 0.0
  %757 = vmatpush1.msra.mxu0 0.0
  %758 = vmatprep.subr.mxu0 0.0
  %759 = vmatpush1.msra.mxu0 0.0
  %760 = vmatprep.mubr.f32.mxu0 0.0
  %761 = vmatmul.mubr.f32.gmra.mrb[0].mxu0 %v694
  %v762 = vpop.f32.mrb[0].mxu0
  %v763 = vadd.f32 %v43, %v762
  %v764 = vpop.f32.mrb[0].mxu0
  %v765 = vadd.f32 %v47, %v764
  %766 = vdwg.mxu0
  %767 = vmatprep.subr.mxu0 0.0
  %768 = vmatpush1.msra.mxu0 %v58
  %769 = vmatprep.subr.mxu0 0.0
  %770 = vmatpush1.msra.mxu0 %v61
  %771 = vmatprep.subr.mxu0 0.0
  %772 = vmatpush1.msra.mxu0 %v64
  %773 = vmatprep.subr.mxu0 0.0
  %774 = vmatpush1.msra.mxu0 %v67
  %775 = vmatprep.subr.mxu0 0.0
  %776 = vmatpush1.msra.mxu0 %v70
  %777 = vmatprep.subr.mxu0 0.0
  %778 = vmatpush1.msra.mxu0 %v73
  %779 = vmatprep.subr.mxu0 0.0
  %780 = vmatpush1.msra.mxu0 %v76
  %781 = vmatprep.subr.mxu0 0.0
  %782 = vmatpush1.msra.mxu0 %v79
  %783 = vmatprep.subr.mxu0 0.0
  %784 = vmatpush1.msra.mxu0 %v82
  %785 = vmatprep.subr.mxu0 0.0
  %786 = vmatpush1.msra.mxu0 %v98
  %787 = vmatprep.subr.mxu0 0.0
  %788 = vmatpush1.msra.mxu0 0.0
  %789 = vmatprep.subr.mxu0 0.0
  %790 = vmatpush1.msra.mxu0 0.0
  %791 = vmatprep.subr.mxu0 0.0
  %792 = vmatpush1.msra.mxu0 0.0
  %793 = vmatprep.subr.mxu0 0.0
  %794 = vmatpush1.msra.mxu0 0.0
  %795 = vmatprep.subr.mxu0 0.0
  %796 = vmatpush1.msra.mxu0 0.0
  %797 = vmatprep.subr.mxu0 0.0
  %798 = vmatpush1.msra.mxu0 0.0
  %799 = vmatprep.subr.mxu0 0.0
  %800 = vmatpush1.msra.mxu0 0.0
  %801 = vmatprep.subr.mxu0 0.0
  %802 = vmatpush1.msra.mxu0 0.0
  %803 = vmatprep.subr.mxu0 0.0
  %804 = vmatpush1.msra.mxu0 0.0
  %805 = vmatprep.subr.mxu0 0.0
  %806 = vmatpush1.msra.mxu0 0.0
  %807 = vmatprep.subr.mxu0 0.0
  %808 = vmatpush1.msra.mxu0 0.0
  %809 = vmatprep.subr.mxu0 0.0
  %810 = vmatpush1.msra.mxu0 0.0
  %811 = vmatprep.subr.mxu0 0.0
  %812 = vmatpush1.msra.mxu0 0.0
  %813 = vmatprep.subr.mxu0 0.0
  %814 = vmatpush1.msra.mxu0 0.0
  %815 = vmatprep.subr.mxu0 0.0
  %816 = vmatpush1.msra.mxu0 0.0
  %817 = vmatprep.subr.mxu0 0.0
  %818 = vmatpush1.msra.mxu0 0.0
  %819 = vmatprep.subr.mxu0 0.0
  %820 = vmatpush1.msra.mxu0 0.0
  %821 = vmatprep.subr.mxu0 0.0
  %822 = vmatpush1.msra.mxu0 0.0
  %823 = vmatprep.subr.mxu0 0.0
  %824 = vmatpush1.msra.mxu0 0.0
  %825 = vmatprep.subr.mxu0 0.0
  %826 = vmatpush1.msra.mxu0 0.0
  %827 = vmatprep.subr.mxu0 0.0
  %828 = vmatpush1.msra.mxu0 0.0
  %829 = vmatprep.subr.mxu0 0.0
  %830 = vmatpush1.msra.mxu0 0.0
  %831 = vmatprep.mubr.f32.mxu0 0.0
  %832 = vmatmul.mubr.f32.gmra.mrb[0].mxu0 %v694
  %v833 = vpop.f32.mrb[0].mxu0
  %v834 = vadd.f32 %v51, %v833
  %v835 = vpop.f32.mrb[0].mxu0
  %836 = vdwg.mxu0
  %v837 = vmax.f32 %v763, 0.0
  %v838 = vmax.f32 %v765, 0.0
  %v839 = vmax.f32 %v834, 0.0
  %v840 = vadd.f32 %v390, %v688
  %v841 = vadd.f32 %v391, %v689
  %v842 = vadd.f32 %v392, %v690
  %v843 = vadd.f32 %v539, %v837
  %v844 = vadd.f32 %v540, %v838
  %v845 = vadd.f32 %v541, %v839
  %v846 = vsub.f32 %v390, %v688
  %v847 = vsub.f32 %v391, %v689
  %v848 = vsub.f32 %v392, %v690
  %v849 = vand.u32 2147483647, %v846
  %v850 = vand.u32 2147483647, %v847
  %v851 = vand.u32 2147483647, %v848
  %v852 = vld [vmem:[%s4] sm:$0x1]
  %v854 = vlaneseq
  %v855 = vshrl.u32 %v854, 7
  %v856 = vsub.s32 0, %v855
  %v857 = vrot.slane %v852, %v856
  %v859 = vld [vmem:[%s3] sm:$0xff]
  %v860 = vld [vmem:[%s3 + $0x8] sm:$0xff]
  %v861 = vld [vmem:[%s3 + $0x10] sm:$0xff]
  %v862 = vld [vmem:[%s3 + $0x18] sm:$0xff]
  %v863 = vld [vmem:[%s3 + $0x20] sm:$0xff]
  %v864 = vld [vmem:[%s3 + $0x28] sm:$0xff]
  %v865 = vld [vmem:[%s3 + $0x30] sm:$0xff]
  %v866 = vld [vmem:[%s3 + $0x38] sm:$0xff]
  %v867 = vld [vmem:[%s3 + $0x40] sm:$0xff]
  %v868 = vld [vmem:[%s3 + $0x48] sm:$0xff]
  %v869 = vld [vmem:[%s3 + $0x50] sm:$0xff]
  %v870 = vld [vmem:[%s3 + $0x58] sm:$0xff]
  %v871 = vld [vmem:[%s3 + $0x60] sm:$0xff]
  %v872 = vld [vmem:[%s3 + $0x68] sm:$0xff]
  %v873 = vld [vmem:[%s3 + $0x70] sm:$0xff]
  %v874 = vld [vmem:[%s3 + $0x78] sm:$0xff]
  %v875 = vld [vmem:[%s3 + $0x80] sm:$0xff]
  %v876 = vld [vmem:[%s3 + $0x88] sm:$0xff]
  %v877 = vld [vmem:[%s3 + $0x90] sm:$0xff]
  %v878 = vld [vmem:[%s3 + $0x98] sm:$0xff]
  %v879 = vld [vmem:[%s3 + $0xa0] sm:$0xff]
  %v880 = vld [vmem:[%s3 + $0xa8] sm:$0xff]
  %v881 = vld [vmem:[%s3 + $0xb0] sm:$0xff]
  %v882 = vld [vmem:[%s3 + $0xb8] sm:$0xff]
  %v883 = vld [vmem:[%s3 + $0xc0] sm:$0xff]
  %v884 = vld [vmem:[%s3 + $0xc8] sm:$0xff]
  %v885 = vld [vmem:[%s3 + $0xd0] sm:$0xff]
  %v886 = vld [vmem:[%s3 + $0xd8] sm:$0xff]
  %v887 = vld [vmem:[%s3 + $0xe0] sm:$0xff]
  %v888 = vld [vmem:[%s3 + $0xe8] sm:$0xff]
  %v889 = vld [vmem:[%s3 + $0xf0] sm:$0xff]
  %v890 = vld [vmem:[%s3 + $0xf8] sm:$0xff]
  %v891 = vld [vmem:[%s3 + $0x100] sm:$0xff]
  %v892 = vld [vmem:[%s3 + $0x108] sm:$0xff]
  %v893 = vld [vmem:[%s3 + $0x110] sm:$0xff]
  %v894 = vld [vmem:[%s3 + $0x118] sm:$0xff]
  %v895 = vld [vmem:[%s3 + $0x120] sm:$0xff]
  %v896 = vld [vmem:[%s3 + $0x128] sm:$0xff]
  %v897 = vld [vmem:[%s3 + $0x130] sm:$0xff]
  %v898 = vld [vmem:[%s3 + $0x138] sm:$0xff]
  %vm899 = vcmask 523264
  %v901 = vsel %vm899, %v243, 0
  %903 = vmatprep.subr.mxu0 0.0
  %904 = vmatpush1.msra.mxu0 %v859
  %905 = vmatprep.subr.mxu0 0.0
  %906 = vmatpush1.msra.mxu0 %v860
  %907 = vmatprep.subr.mxu0 0.0
  %908 = vmatpush1.msra.mxu0 %v861
  %909 = vmatprep.subr.mxu0 0.0
  %910 = vmatpush1.msra.mxu0 %v862
  %911 = vmatprep.subr.mxu0 0.0
  %912 = vmatpush1.msra.mxu0 %v863
  %913 = vmatprep.subr.mxu0 0.0
  %914 = vmatpush1.msra.mxu0 %v864
  %915 = vmatprep.subr.mxu0 0.0
  %916 = vmatpush1.msra.mxu0 %v865
  %917 = vmatprep.subr.mxu0 0.0
  %918 = vmatpush1.msra.mxu0 %v866
  %919 = vmatprep.subr.mxu0 0.0
  %920 = vmatpush1.msra.mxu0 %v867
  %921 = vmatprep.subr.mxu0 0.0
  %922 = vmatpush1.msra.mxu0 %v868
  %923 = vmatprep.subr.mxu0 0.0
  %924 = vmatpush1.msra.mxu0 %v869
  %925 = vmatprep.subr.mxu0 0.0
  %926 = vmatpush1.msra.mxu0 %v870
  %927 = vmatprep.subr.mxu0 0.0
  %928 = vmatpush1.msra.mxu0 %v871
  %929 = vmatprep.subr.mxu0 0.0
  %930 = vmatpush1.msra.mxu0 %v872
  %931 = vmatprep.subr.mxu0 0.0
  %932 = vmatpush1.msra.mxu0 %v873
  %933 = vmatprep.subr.mxu0 0.0
  %934 = vmatpush1.msra.mxu0 %v874
  %935 = vmatprep.subr.mxu0 0.0
  %936 = vmatpush1.msra.mxu0 %v875
  %937 = vmatprep.subr.mxu0 0.0
  %938 = vmatpush1.msra.mxu0 %v876
  %939 = vmatprep.subr.mxu0 0.0
  %940 = vmatpush1.msra.mxu0 %v877
  %941 = vmatprep.subr.mxu0 0.0
  %942 = vmatpush1.msra.mxu0 %v878
  %943 = vmatprep.subr.mxu0 0.0
  %944 = vmatpush1.msra.mxu0 %v879
  %945 = vmatprep.subr.mxu0 0.0
  %946 = vmatpush1.msra.mxu0 %v880
  %947 = vmatprep.subr.mxu0 0.0
  %948 = vmatpush1.msra.mxu0 %v881
  %949 = vmatprep.subr.mxu0 0.0
  %950 = vmatpush1.msra.mxu0 %v882
  %951 = vmatprep.subr.mxu0 0.0
  %952 = vmatpush1.msra.mxu0 %v883
  %953 = vmatprep.subr.mxu0 0.0
  %954 = vmatpush1.msra.mxu0 %v884
  %955 = vmatprep.subr.mxu0 0.0
  %956 = vmatpush1.msra.mxu0 %v885
  %957 = vmatprep.subr.mxu0 0.0
  %958 = vmatpush1.msra.mxu0 %v886
  %959 = vmatprep.subr.mxu0 0.0
  %960 = vmatpush1.msra.mxu0 %v887
  %961 = vmatprep.subr.mxu0 0.0
  %962 = vmatpush1.msra.mxu0 %v888
  %963 = vmatprep.subr.mxu0 0.0
  %964 = vmatpush1.msra.mxu0 %v889
  %965 = vmatprep.subr.mxu0 0.0
  %966 = vmatpush1.msra.mxu0 %v890
  %967 = vmatprep.mubr.f32.mxu0 %v242
  %968 = vmatmul.mubr.f32.gmra.mrb[0].mxu0 %v241
  %v969 = vpop.f32.mrb[0].mxu0
  %v970 = vadd.f32 %v857, %v969
  %v971 = vpop.f32.mrb[0].mxu0
  %972 = vdwg.mxu0
  %973 = vmatprep.subr.mxu0 0.0
  %974 = vmatpush1.msra.mxu0 %v891
  %975 = vmatprep.subr.mxu0 0.0
  %976 = vmatpush1.msra.mxu0 %v892
  %977 = vmatprep.subr.mxu0 0.0
  %978 = vmatpush1.msra.mxu0 %v893
  %979 = vmatprep.subr.mxu0 0.0
  %980 = vmatpush1.msra.mxu0 %v894
  %981 = vmatprep.subr.mxu0 0.0
  %982 = vmatpush1.msra.mxu0 %v895
  %983 = vmatprep.subr.mxu0 0.0
  %984 = vmatpush1.msra.mxu0 %v896
  %985 = vmatprep.subr.mxu0 0.0
  %986 = vmatpush1.msra.mxu0 %v897
  %987 = vmatprep.subr.mxu0 0.0
  %988 = vmatpush1.msra.mxu0 %v898
  %989 = vmatprep.subr.mxu0 0.0
  %990 = vmatpush1.msra.mxu0 0.0
  %991 = vmatprep.subr.mxu0 0.0
  %992 = vmatpush1.msra.mxu0 0.0
  %993 = vmatprep.subr.mxu0 0.0
  %994 = vmatpush1.msra.mxu0 0.0
  %995 = vmatprep.subr.mxu0 0.0
  %996 = vmatpush1.msra.mxu0 0.0
  %997 = vmatprep.subr.mxu0 0.0
  %998 = vmatpush1.msra.mxu0 0.0
  %999 = vmatprep.subr.mxu0 0.0
  %1000 = vmatpush1.msra.mxu0 0.0
  %1001 = vmatprep.subr.mxu0 0.0
  %1002 = vmatpush1.msra.mxu0 0.0
  %1003 = vmatprep.subr.mxu0 0.0
  %1004 = vmatpush1.msra.mxu0 0.0
  %1005 = vmatprep.subr.mxu0 0.0
  %1006 = vmatpush1.msra.mxu0 0.0
  %1007 = vmatprep.subr.mxu0 0.0
  %1008 = vmatpush1.msra.mxu0 0.0
  %1009 = vmatprep.subr.mxu0 0.0
  %1010 = vmatpush1.msra.mxu0 0.0
  %1011 = vmatprep.subr.mxu0 0.0
  %1012 = vmatpush1.msra.mxu0 0.0
  %1013 = vmatprep.subr.mxu0 0.0
  %1014 = vmatpush1.msra.mxu0 0.0
  %1015 = vmatprep.subr.mxu0 0.0
  %1016 = vmatpush1.msra.mxu0 0.0
  %1017 = vmatprep.subr.mxu0 0.0
  %1018 = vmatpush1.msra.mxu0 0.0
  %1019 = vmatprep.subr.mxu0 0.0
  %1020 = vmatpush1.msra.mxu0 0.0
  %1021 = vmatprep.subr.mxu0 0.0
  %1022 = vmatpush1.msra.mxu0 0.0
  %1023 = vmatprep.subr.mxu0 0.0
  %1024 = vmatpush1.msra.mxu0 0.0
  %1025 = vmatprep.subr.mxu0 0.0
  %1026 = vmatpush1.msra.mxu0 0.0
  %1027 = vmatprep.subr.mxu0 0.0
  %1028 = vmatpush1.msra.mxu0 0.0
  %1029 = vmatprep.subr.mxu0 0.0
  %1030 = vmatpush1.msra.mxu0 0.0
  %1031 = vmatprep.subr.mxu0 0.0
  %1032 = vmatpush1.msra.mxu0 0.0
  %1033 = vmatprep.subr.mxu0 0.0
  %1034 = vmatpush1.msra.mxu0 0.0
  %1035 = vmatprep.subr.mxu0 0.0
  %1036 = vmatpush1.msra.mxu0 0.0
  %1037 = vmatprep.mubr.f32.mxu0 0.0
  %1038 = vmatmul.mubr.f32.gmra.mrb[0].mxu0 %v901
  %v1039 = vpop.f32.mrb[0].mxu0
  %v1040 = vadd.f32 %v970, %v1039
  %v1041 = vpop.f32.mrb[0].mxu0
  %1042 = vdwg.mxu0
  %v1043 = vmax.f32 %v1040, 0.0
  %v1045 = vsel %vm899, %v842, 0
  %1047 = vmatprep.subr.mxu0 0.0
  %1048 = vmatpush1.msra.mxu0 %v859
  %1049 = vmatprep.subr.mxu0 0.0
  %1050 = vmatpush1.msra.mxu0 %v860
  %1051 = vmatprep.subr.mxu0 0.0
  %1052 = vmatpush1.msra.mxu0 %v861
  %1053 = vmatprep.subr.mxu0 0.0
  %1054 = vmatpush1.msra.mxu0 %v862
  %1055 = vmatprep.subr.mxu0 0.0
  %1056 = vmatpush1.msra.mxu0 %v863
  %1057 = vmatprep.subr.mxu0 0.0
  %1058 = vmatpush1.msra.mxu0 %v864
  %1059 = vmatprep.subr.mxu0 0.0
  %1060 = vmatpush1.msra.mxu0 %v865
  %1061 = vmatprep.subr.mxu0 0.0
  %1062 = vmatpush1.msra.mxu0 %v866
  %1063 = vmatprep.subr.mxu0 0.0
  %1064 = vmatpush1.msra.mxu0 %v867
  %1065 = vmatprep.subr.mxu0 0.0
  %1066 = vmatpush1.msra.mxu0 %v868
  %1067 = vmatprep.subr.mxu0 0.0
  %1068 = vmatpush1.msra.mxu0 %v869
  %1069 = vmatprep.subr.mxu0 0.0
  %1070 = vmatpush1.msra.mxu0 %v870
  %1071 = vmatprep.subr.mxu0 0.0
  %1072 = vmatpush1.msra.mxu0 %v871
  %1073 = vmatprep.subr.mxu0 0.0
  %1074 = vmatpush1.msra.mxu0 %v872
  %1075 = vmatprep.subr.mxu0 0.0
  %1076 = vmatpush1.msra.mxu0 %v873
  %1077 = vmatprep.subr.mxu0 0.0
  %1078 = vmatpush1.msra.mxu0 %v874
  %1079 = vmatprep.subr.mxu0 0.0
  %1080 = vmatpush1.msra.mxu0 %v875
  %1081 = vmatprep.subr.mxu0 0.0
  %1082 = vmatpush1.msra.mxu0 %v876
  %1083 = vmatprep.subr.mxu0 0.0
  %1084 = vmatpush1.msra.mxu0 %v877
  %1085 = vmatprep.subr.mxu0 0.0
  %1086 = vmatpush1.msra.mxu0 %v878
  %1087 = vmatprep.subr.mxu0 0.0
  %1088 = vmatpush1.msra.mxu0 %v879
  %1089 = vmatprep.subr.mxu0 0.0
  %1090 = vmatpush1.msra.mxu0 %v880
  %1091 = vmatprep.subr.mxu0 0.0
  %1092 = vmatpush1.msra.mxu0 %v881
  %1093 = vmatprep.subr.mxu0 0.0
  %1094 = vmatpush1.msra.mxu0 %v882
  %1095 = vmatprep.subr.mxu0 0.0
  %1096 = vmatpush1.msra.mxu0 %v883
  %1097 = vmatprep.subr.mxu0 0.0
  %1098 = vmatpush1.msra.mxu0 %v884
  %1099 = vmatprep.subr.mxu0 0.0
  %1100 = vmatpush1.msra.mxu0 %v885
  %1101 = vmatprep.subr.mxu0 0.0
  %1102 = vmatpush1.msra.mxu0 %v886
  %1103 = vmatprep.subr.mxu0 0.0
  %1104 = vmatpush1.msra.mxu0 %v887
  %1105 = vmatprep.subr.mxu0 0.0
  %1106 = vmatpush1.msra.mxu0 %v888
  %1107 = vmatprep.subr.mxu0 0.0
  %1108 = vmatpush1.msra.mxu0 %v889
  %1109 = vmatprep.subr.mxu0 0.0
  %1110 = vmatpush1.msra.mxu0 %v890
  %1111 = vmatprep.mubr.f32.mxu0 %v841
  %1112 = vmatmul.mubr.f32.gmra.mrb[0].mxu0 %v840
  %v1113 = vpop.f32.mrb[0].mxu0
  %v1114 = vadd.f32 %v857, %v1113
  %v1115 = vpop.f32.mrb[0].mxu0
  %1116 = vdwg.mxu0
  %1117 = vmatprep.subr.mxu0 0.0
  %1118 = vmatpush1.msra.mxu0 %v891
  %1119 = vmatprep.subr.mxu0 0.0
  %1120 = vmatpush1.msra.mxu0 %v892
  %1121 = vmatprep.subr.mxu0 0.0
  %1122 = vmatpush1.msra.mxu0 %v893
  %1123 = vmatprep.subr.mxu0 0.0
  %1124 = vmatpush1.msra.mxu0 %v894
  %1125 = vmatprep.subr.mxu0 0.0
  %1126 = vmatpush1.msra.mxu0 %v895
  %1127 = vmatprep.subr.mxu0 0.0
  %1128 = vmatpush1.msra.mxu0 %v896
  %1129 = vmatprep.subr.mxu0 0.0
  %1130 = vmatpush1.msra.mxu0 %v897
  %1131 = vmatprep.subr.mxu0 0.0
  %1132 = vmatpush1.msra.mxu0 %v898
  %1133 = vmatprep.subr.mxu0 0.0
  %1134 = vmatpush1.msra.mxu0 0.0
  %1135 = vmatprep.subr.mxu0 0.0
  %1136 = vmatpush1.msra.mxu0 0.0
  %1137 = vmatprep.subr.mxu0 0.0
  %1138 = vmatpush1.msra.mxu0 0.0
  %1139 = vmatprep.subr.mxu0 0.0
  %1140 = vmatpush1.msra.mxu0 0.0
  %1141 = vmatprep.subr.mxu0 0.0
  %1142 = vmatpush1.msra.mxu0 0.0
  %1143 = vmatprep.subr.mxu0 0.0
  %1144 = vmatpush1.msra.mxu0 0.0
  %1145 = vmatprep.subr.mxu0 0.0
  %1146 = vmatpush1.msra.mxu0 0.0
  %1147 = vmatprep.subr.mxu0 0.0
  %1148 = vmatpush1.msra.mxu0 0.0
  %1149 = vmatprep.subr.mxu0 0.0
  %1150 = vmatpush1.msra.mxu0 0.0
  %1151 = vmatprep.subr.mxu0 0.0
  %1152 = vmatpush1.msra.mxu0 0.0
  %1153 = vmatprep.subr.mxu0 0.0
  %1154 = vmatpush1.msra.mxu0 0.0
  %1155 = vmatprep.subr.mxu0 0.0
  %1156 = vmatpush1.msra.mxu0 0.0
  %1157 = vmatprep.subr.mxu0 0.0
  %1158 = vmatpush1.msra.mxu0 0.0
  %1159 = vmatprep.subr.mxu0 0.0
  %1160 = vmatpush1.msra.mxu0 0.0
  %1161 = vmatprep.subr.mxu0 0.0
  %1162 = vmatpush1.msra.mxu0 0.0
  %1163 = vmatprep.subr.mxu0 0.0
  %1164 = vmatpush1.msra.mxu0 0.0
  %1165 = vmatprep.subr.mxu0 0.0
  %1166 = vmatpush1.msra.mxu0 0.0
  %1167 = vmatprep.subr.mxu0 0.0
  %1168 = vmatpush1.msra.mxu0 0.0
  %1169 = vmatprep.subr.mxu0 0.0
  %1170 = vmatpush1.msra.mxu0 0.0
  %1171 = vmatprep.subr.mxu0 0.0
  %1172 = vmatpush1.msra.mxu0 0.0
  %1173 = vmatprep.subr.mxu0 0.0
  %1174 = vmatpush1.msra.mxu0 0.0
  %1175 = vmatprep.subr.mxu0 0.0
  %1176 = vmatpush1.msra.mxu0 0.0
  %1177 = vmatprep.subr.mxu0 0.0
  %1178 = vmatpush1.msra.mxu0 0.0
  %1179 = vmatprep.subr.mxu0 0.0
  %1180 = vmatpush1.msra.mxu0 0.0
  %1181 = vmatprep.mubr.f32.mxu0 0.0
  %1182 = vmatmul.mubr.f32.gmra.mrb[0].mxu0 %v1045
  %v1183 = vpop.f32.mrb[0].mxu0
  %v1184 = vadd.f32 %v1114, %v1183
  %v1185 = vpop.f32.mrb[0].mxu0
  %1186 = vdwg.mxu0
  %v1187 = vmax.f32 %v1184, 0.0
  %v1189 = vsel %vm899, %v845, 0
  %1191 = vmatprep.subr.mxu0 0.0
  %1192 = vmatpush1.msra.mxu0 %v859
  %1193 = vmatprep.subr.mxu0 0.0
  %1194 = vmatpush1.msra.mxu0 %v860
  %1195 = vmatprep.subr.mxu0 0.0
  %1196 = vmatpush1.msra.mxu0 %v861
  %1197 = vmatprep.subr.mxu0 0.0
  %1198 = vmatpush1.msra.mxu0 %v862
  %1199 = vmatprep.subr.mxu0 0.0
  %1200 = vmatpush1.msra.mxu0 %v863
  %1201 = vmatprep.subr.mxu0 0.0
  %1202 = vmatpush1.msra.mxu0 %v864
  %1203 = vmatprep.subr.mxu0 0.0
  %1204 = vmatpush1.msra.mxu0 %v865
  %1205 = vmatprep.subr.mxu0 0.0
  %1206 = vmatpush1.msra.mxu0 %v866
  %1207 = vmatprep.subr.mxu0 0.0
  %1208 = vmatpush1.msra.mxu0 %v867
  %1209 = vmatprep.subr.mxu0 0.0
  %1210 = vmatpush1.msra.mxu0 %v868
  %1211 = vmatprep.subr.mxu0 0.0
  %1212 = vmatpush1.msra.mxu0 %v869
  %1213 = vmatprep.subr.mxu0 0.0
  %1214 = vmatpush1.msra.mxu0 %v870
  %1215 = vmatprep.subr.mxu0 0.0
  %1216 = vmatpush1.msra.mxu0 %v871
  %1217 = vmatprep.subr.mxu0 0.0
  %1218 = vmatpush1.msra.mxu0 %v872
  %1219 = vmatprep.subr.mxu0 0.0
  %1220 = vmatpush1.msra.mxu0 %v873
  %1221 = vmatprep.subr.mxu0 0.0
  %1222 = vmatpush1.msra.mxu0 %v874
  %1223 = vmatprep.subr.mxu0 0.0
  %1224 = vmatpush1.msra.mxu0 %v875
  %1225 = vmatprep.subr.mxu0 0.0
  %1226 = vmatpush1.msra.mxu0 %v876
  %1227 = vmatprep.subr.mxu0 0.0
  %1228 = vmatpush1.msra.mxu0 %v877
  %1229 = vmatprep.subr.mxu0 0.0
  %1230 = vmatpush1.msra.mxu0 %v878
  %1231 = vmatprep.subr.mxu0 0.0
  %1232 = vmatpush1.msra.mxu0 %v879
  %1233 = vmatprep.subr.mxu0 0.0
  %1234 = vmatpush1.msra.mxu0 %v880
  %1235 = vmatprep.subr.mxu0 0.0
  %1236 = vmatpush1.msra.mxu0 %v881
  %1237 = vmatprep.subr.mxu0 0.0
  %1238 = vmatpush1.msra.mxu0 %v882
  %1239 = vmatprep.subr.mxu0 0.0
  %1240 = vmatpush1.msra.mxu0 %v883
  %1241 = vmatprep.subr.mxu0 0.0
  %1242 = vmatpush1.msra.mxu0 %v884
  %1243 = vmatprep.subr.mxu0 0.0
  %1244 = vmatpush1.msra.mxu0 %v885
  %1245 = vmatprep.subr.mxu0 0.0
  %1246 = vmatpush1.msra.mxu0 %v886
  %1247 = vmatprep.subr.mxu0 0.0
  %1248 = vmatpush1.msra.mxu0 %v887
  %1249 = vmatprep.subr.mxu0 0.0
  %1250 = vmatpush1.msra.mxu0 %v888
  %1251 = vmatprep.subr.mxu0 0.0
  %1252 = vmatpush1.msra.mxu0 %v889
  %1253 = vmatprep.subr.mxu0 0.0
  %1254 = vmatpush1.msra.mxu0 %v890
  %1255 = vmatprep.mubr.f32.mxu0 %v844
  %1256 = vmatmul.mubr.f32.gmra.mrb[0].mxu0 %v843
  %v1257 = vpop.f32.mrb[0].mxu0
  %v1258 = vadd.f32 %v857, %v1257
  %v1259 = vpop.f32.mrb[0].mxu0
  %1260 = vdwg.mxu0
  %1261 = vmatprep.subr.mxu0 0.0
  %1262 = vmatpush1.msra.mxu0 %v891
  %1263 = vmatprep.subr.mxu0 0.0
  %1264 = vmatpush1.msra.mxu0 %v892
  %1265 = vmatprep.subr.mxu0 0.0
  %1266 = vmatpush1.msra.mxu0 %v893
  %1267 = vmatprep.subr.mxu0 0.0
  %1268 = vmatpush1.msra.mxu0 %v894
  %1269 = vmatprep.subr.mxu0 0.0
  %1270 = vmatpush1.msra.mxu0 %v895
  %1271 = vmatprep.subr.mxu0 0.0
  %1272 = vmatpush1.msra.mxu0 %v896
  %1273 = vmatprep.subr.mxu0 0.0
  %1274 = vmatpush1.msra.mxu0 %v897
  %1275 = vmatprep.subr.mxu0 0.0
  %1276 = vmatpush1.msra.mxu0 %v898
  %1277 = vmatprep.subr.mxu0 0.0
  %1278 = vmatpush1.msra.mxu0 0.0
  %1279 = vmatprep.subr.mxu0 0.0
  %1280 = vmatpush1.msra.mxu0 0.0
  %1281 = vmatprep.subr.mxu0 0.0
  %1282 = vmatpush1.msra.mxu0 0.0
  %1283 = vmatprep.subr.mxu0 0.0
  %1284 = vmatpush1.msra.mxu0 0.0
  %1285 = vmatprep.subr.mxu0 0.0
  %1286 = vmatpush1.msra.mxu0 0.0
  %1287 = vmatprep.subr.mxu0 0.0
  %1288 = vmatpush1.msra.mxu0 0.0
  %1289 = vmatprep.subr.mxu0 0.0
  %1290 = vmatpush1.msra.mxu0 0.0
  %1291 = vmatprep.subr.mxu0 0.0
  %1292 = vmatpush1.msra.mxu0 0.0
  %1293 = vmatprep.subr.mxu0 0.0
  %1294 = vmatpush1.msra.mxu0 0.0
  %1295 = vmatprep.subr.mxu0 0.0
  %1296 = vmatpush1.msra.mxu0 0.0
  %1297 = vmatprep.subr.mxu0 0.0
  %1298 = vmatpush1.msra.mxu0 0.0
  %1299 = vmatprep.subr.mxu0 0.0
  %1300 = vmatpush1.msra.mxu0 0.0
  %1301 = vmatprep.subr.mxu0 0.0
  %1302 = vmatpush1.msra.mxu0 0.0
  %1303 = vmatprep.subr.mxu0 0.0
  %1304 = vmatpush1.msra.mxu0 0.0
  %1305 = vmatprep.subr.mxu0 0.0
  %1306 = vmatpush1.msra.mxu0 0.0
  %1307 = vmatprep.subr.mxu0 0.0
  %1308 = vmatpush1.msra.mxu0 0.0
  %1309 = vmatprep.subr.mxu0 0.0
  %1310 = vmatpush1.msra.mxu0 0.0
  %1311 = vmatprep.subr.mxu0 0.0
  %1312 = vmatpush1.msra.mxu0 0.0
  %1313 = vmatprep.subr.mxu0 0.0
  %1314 = vmatpush1.msra.mxu0 0.0
  %1315 = vmatprep.subr.mxu0 0.0
  %1316 = vmatpush1.msra.mxu0 0.0
  %1317 = vmatprep.subr.mxu0 0.0
  %1318 = vmatpush1.msra.mxu0 0.0
  %1319 = vmatprep.subr.mxu0 0.0
  %1320 = vmatpush1.msra.mxu0 0.0
  %1321 = vmatprep.subr.mxu0 0.0
  %1322 = vmatpush1.msra.mxu0 0.0
  %1323 = vmatprep.subr.mxu0 0.0
  %1324 = vmatpush1.msra.mxu0 0.0
  %1325 = vmatprep.mubr.f32.mxu0 0.0
  %1326 = vmatmul.mubr.f32.gmra.mrb[0].mxu0 %v1189
  %v1327 = vpop.f32.mrb[0].mxu0
  %v1328 = vadd.f32 %v1258, %v1327
  %v1329 = vpop.f32.mrb[0].mxu0
  %1330 = vdwg.mxu0
  %v1331 = vmax.f32 %v1328, 0.0
  %v1333 = vsel %vm899, %v851, 0
  %1335 = vmatprep.subr.mxu0 0.0
  %1336 = vmatpush1.msra.mxu0 %v859
  %1337 = vmatprep.subr.mxu0 0.0
  %1338 = vmatpush1.msra.mxu0 %v860
  %1339 = vmatprep.subr.mxu0 0.0
  %1340 = vmatpush1.msra.mxu0 %v861
  %1341 = vmatprep.subr.mxu0 0.0
  %1342 = vmatpush1.msra.mxu0 %v862
  %1343 = vmatprep.subr.mxu0 0.0
  %1344 = vmatpush1.msra.mxu0 %v863
  %1345 = vmatprep.subr.mxu0 0.0
  %1346 = vmatpush1.msra.mxu0 %v864
  %1347 = vmatprep.subr.mxu0 0.0
  %1348 = vmatpush1.msra.mxu0 %v865
  %1349 = vmatprep.subr.mxu0 0.0
  %1350 = vmatpush1.msra.mxu0 %v866
  %1351 = vmatprep.subr.mxu0 0.0
  %1352 = vmatpush1.msra.mxu0 %v867
  %1353 = vmatprep.subr.mxu0 0.0
  %1354 = vmatpush1.msra.mxu0 %v868
  %1355 = vmatprep.subr.mxu0 0.0
  %1356 = vmatpush1.msra.mxu0 %v869
  %1357 = vmatprep.subr.mxu0 0.0
  %1358 = vmatpush1.msra.mxu0 %v870
  %1359 = vmatprep.subr.mxu0 0.0
  %1360 = vmatpush1.msra.mxu0 %v871
  %1361 = vmatprep.subr.mxu0 0.0
  %1362 = vmatpush1.msra.mxu0 %v872
  %1363 = vmatprep.subr.mxu0 0.0
  %1364 = vmatpush1.msra.mxu0 %v873
  %1365 = vmatprep.subr.mxu0 0.0
  %1366 = vmatpush1.msra.mxu0 %v874
  %1367 = vmatprep.subr.mxu0 0.0
  %1368 = vmatpush1.msra.mxu0 %v875
  %1369 = vmatprep.subr.mxu0 0.0
  %1370 = vmatpush1.msra.mxu0 %v876
  %1371 = vmatprep.subr.mxu0 0.0
  %1372 = vmatpush1.msra.mxu0 %v877
  %1373 = vmatprep.subr.mxu0 0.0
  %1374 = vmatpush1.msra.mxu0 %v878
  %1375 = vmatprep.subr.mxu0 0.0
  %1376 = vmatpush1.msra.mxu0 %v879
  %1377 = vmatprep.subr.mxu0 0.0
  %1378 = vmatpush1.msra.mxu0 %v880
  %1379 = vmatprep.subr.mxu0 0.0
  %1380 = vmatpush1.msra.mxu0 %v881
  %1381 = vmatprep.subr.mxu0 0.0
  %1382 = vmatpush1.msra.mxu0 %v882
  %1383 = vmatprep.subr.mxu0 0.0
  %1384 = vmatpush1.msra.mxu0 %v883
  %1385 = vmatprep.subr.mxu0 0.0
  %1386 = vmatpush1.msra.mxu0 %v884
  %1387 = vmatprep.subr.mxu0 0.0
  %1388 = vmatpush1.msra.mxu0 %v885
  %1389 = vmatprep.subr.mxu0 0.0
  %1390 = vmatpush1.msra.mxu0 %v886
  %1391 = vmatprep.subr.mxu0 0.0
  %1392 = vmatpush1.msra.mxu0 %v887
  %1393 = vmatprep.subr.mxu0 0.0
  %1394 = vmatpush1.msra.mxu0 %v888
  %1395 = vmatprep.subr.mxu0 0.0
  %1396 = vmatpush1.msra.mxu0 %v889
  %1397 = vmatprep.subr.mxu0 0.0
  %1398 = vmatpush1.msra.mxu0 %v890
  %1399 = vmatprep.mubr.f32.mxu0 %v850
  %1400 = vmatmul.mubr.f32.gmra.mrb[0].mxu0 %v849
  %v1401 = vpop.f32.mrb[0].mxu0
  %v1402 = vadd.f32 %v857, %v1401
  %v1403 = vpop.f32.mrb[0].mxu0
  %1404 = vdwg.mxu0
  %1405 = vmatprep.subr.mxu0 0.0
  %1406 = vmatpush1.msra.mxu0 %v891
  %1407 = vmatprep.subr.mxu0 0.0
  %1408 = vmatpush1.msra.mxu0 %v892
  %1409 = vmatprep.subr.mxu0 0.0
  %1410 = vmatpush1.msra.mxu0 %v893
  %1411 = vmatprep.subr.mxu0 0.0
  %1412 = vmatpush1.msra.mxu0 %v894
  %1413 = vmatprep.subr.mxu0 0.0
  %1414 = vmatpush1.msra.mxu0 %v895
  %1415 = vmatprep.subr.mxu0 0.0
  %1416 = vmatpush1.msra.mxu0 %v896
  %1417 = vmatprep.subr.mxu0 0.0
  %1418 = vmatpush1.msra.mxu0 %v897
  %1419 = vmatprep.subr.mxu0 0.0
  %1420 = vmatpush1.msra.mxu0 %v898
  %1421 = vmatprep.subr.mxu0 0.0
  %1422 = vmatpush1.msra.mxu0 0.0
  %1423 = vmatprep.subr.mxu0 0.0
  %1424 = vmatpush1.msra.mxu0 0.0
  %1425 = vmatprep.subr.mxu0 0.0
  %1426 = vmatpush1.msra.mxu0 0.0
  %1427 = vmatprep.subr.mxu0 0.0
  %1428 = vmatpush1.msra.mxu0 0.0
  %1429 = vmatprep.subr.mxu0 0.0
  %1430 = vmatpush1.msra.mxu0 0.0
  %1431 = vmatprep.subr.mxu0 0.0
  %1432 = vmatpush1.msra.mxu0 0.0
  %1433 = vmatprep.subr.mxu0 0.0
  %1434 = vmatpush1.msra.mxu0 0.0
  %1435 = vmatprep.subr.mxu0 0.0
  %1436 = vmatpush1.msra.mxu0 0.0
  %1437 = vmatprep.subr.mxu0 0.0
  %1438 = vmatpush1.msra.mxu0 0.0
  %1439 = vmatprep.subr.mxu0 0.0
  %1440 = vmatpush1.msra.mxu0 0.0
  %1441 = vmatprep.subr.mxu0 0.0
  %1442 = vmatpush1.msra.mxu0 0.0
  %1443 = vmatprep.subr.mxu0 0.0
  %1444 = vmatpush1.msra.mxu0 0.0
  %1445 = vmatprep.subr.mxu0 0.0
  %1446 = vmatpush1.msra.mxu0 0.0
  %1447 = vmatprep.subr.mxu0 0.0
  %1448 = vmatpush1.msra.mxu0 0.0
  %1449 = vmatprep.subr.mxu0 0.0
  %1450 = vmatpush1.msra.mxu0 0.0
  %1451 = vmatprep.subr.mxu0 0.0
  %1452 = vmatpush1.msra.mxu0 0.0
  %1453 = vmatprep.subr.mxu0 0.0
  %1454 = vmatpush1.msra.mxu0 0.0
  %1455 = vmatprep.subr.mxu0 0.0
  %1456 = vmatpush1.msra.mxu0 0.0
  %1457 = vmatprep.subr.mxu0 0.0
  %1458 = vmatpush1.msra.mxu0 0.0
  %1459 = vmatprep.subr.mxu0 0.0
  %1460 = vmatpush1.msra.mxu0 0.0
  %1461 = vmatprep.subr.mxu0 0.0
  %1462 = vmatpush1.msra.mxu0 0.0
  %1463 = vmatprep.subr.mxu0 0.0
  %1464 = vmatpush1.msra.mxu0 0.0
  %1465 = vmatprep.subr.mxu0 0.0
  %1466 = vmatpush1.msra.mxu0 0.0
  %1467 = vmatprep.subr.mxu0 0.0
  %1468 = vmatpush1.msra.mxu0 0.0
  %1469 = vmatprep.mubr.f32.mxu0 0.0
  %1470 = vmatmul.mubr.f32.gmra.mrb[0].mxu0 %v1333
  %v1471 = vpop.f32.mrb[0].mxu0
  %v1472 = vadd.f32 %v1402, %v1471
  %v1473 = vpop.f32.mrb[0].mxu0
  %1474 = vdwg.mxu0
  %v1475 = vmax.f32 %v1472, 0.0
  %v1476 = vld [vmem:[%s6] sm:$0x1]
  %v1478 = vlaneseq
  %v1479 = vshrl.u32 %v1478, 7
  %v1480 = vsub.s32 0, %v1479
  %v1481 = vrot.slane %v1476, %v1480
  %v1483 = vmax.f32 %v1043, %v1187
  %v1484 = vld [vmem:[%s5] sm:$0xff]
  %v1485 = vld [vmem:[%s5 + $0x8] sm:$0xff]
  %v1486 = vld [vmem:[%s5 + $0x10] sm:$0xff]
  %v1487 = vld [vmem:[%s5 + $0x18] sm:$0xff]
  %v1488 = vld [vmem:[%s5 + $0x20] sm:$0xff]
  %v1489 = vld [vmem:[%s5 + $0x28] sm:$0xff]
  %v1490 = vld [vmem:[%s5 + $0x30] sm:$0xff]
  %v1491 = vld [vmem:[%s5 + $0x38] sm:$0xff]
  %v1492 = vld [vmem:[%s5 + $0x40] sm:$0xff]
  %v1493 = vld [vmem:[%s5 + $0x48] sm:$0xff]
  %v1494 = vld [vmem:[%s5 + $0x50] sm:$0xff]
  %v1495 = vld [vmem:[%s5 + $0x58] sm:$0xff]
  %v1496 = vld [vmem:[%s5 + $0x60] sm:$0xff]
  %v1497 = vld [vmem:[%s5 + $0x68] sm:$0xff]
  %v1498 = vld [vmem:[%s5 + $0x70] sm:$0xff]
  %v1499 = vld [vmem:[%s5 + $0x78] sm:$0xff]
  %1500 = vmatprep.subr.mxu0 0.0
  %1501 = vmatpush1.msra.mxu0 %v1484
  %1502 = vmatprep.subr.mxu0 0.0
  %1503 = vmatpush1.msra.mxu0 %v1485
  %1504 = vmatprep.subr.mxu0 0.0
  %1505 = vmatpush1.msra.mxu0 %v1486
  %1506 = vmatprep.subr.mxu0 0.0
  %1507 = vmatpush1.msra.mxu0 %v1487
  %1508 = vmatprep.subr.mxu0 0.0
  %1509 = vmatpush1.msra.mxu0 %v1488
  %1510 = vmatprep.subr.mxu0 0.0
  %1511 = vmatpush1.msra.mxu0 %v1489
  %1512 = vmatprep.subr.mxu0 0.0
  %1513 = vmatpush1.msra.mxu0 %v1490
  %1514 = vmatprep.subr.mxu0 0.0
  %1515 = vmatpush1.msra.mxu0 %v1491
  %1516 = vmatprep.subr.mxu0 0.0
  %1517 = vmatpush1.msra.mxu0 %v1492
  %1518 = vmatprep.subr.mxu0 0.0
  %1519 = vmatpush1.msra.mxu0 %v1493
  %1520 = vmatprep.subr.mxu0 0.0
  %1521 = vmatpush1.msra.mxu0 %v1494
  %1522 = vmatprep.subr.mxu0 0.0
  %1523 = vmatpush1.msra.mxu0 %v1495
  %1524 = vmatprep.subr.mxu0 0.0
  %1525 = vmatpush1.msra.mxu0 %v1496
  %1526 = vmatprep.subr.mxu0 0.0
  %1527 = vmatpush1.msra.mxu0 %v1497
  %1528 = vmatprep.subr.mxu0 0.0
  %1529 = vmatpush1.msra.mxu0 %v1498
  %1530 = vmatprep.subr.mxu0 0.0
  %1531 = vmatpush1.msra.mxu0 %v1499
  %1532 = vmatprep.subr.mxu0 0.0
  %1533 = vmatpush1.msra.mxu0 0.0
  %1534 = vmatprep.subr.mxu0 0.0
  %1535 = vmatpush1.msra.mxu0 0.0
  %1536 = vmatprep.subr.mxu0 0.0
  %1537 = vmatpush1.msra.mxu0 0.0
  %1538 = vmatprep.subr.mxu0 0.0
  %1539 = vmatpush1.msra.mxu0 0.0
  %1540 = vmatprep.subr.mxu0 0.0
  %1541 = vmatpush1.msra.mxu0 0.0
  %1542 = vmatprep.subr.mxu0 0.0
  %1543 = vmatpush1.msra.mxu0 0.0
  %1544 = vmatprep.subr.mxu0 0.0
  %1545 = vmatpush1.msra.mxu0 0.0
  %1546 = vmatprep.subr.mxu0 0.0
  %1547 = vmatpush1.msra.mxu0 0.0
  %1548 = vmatprep.subr.mxu0 0.0
  %1549 = vmatpush1.msra.mxu0 0.0
  %1550 = vmatprep.subr.mxu0 0.0
  %1551 = vmatpush1.msra.mxu0 0.0
  %1552 = vmatprep.subr.mxu0 0.0
  %1553 = vmatpush1.msra.mxu0 0.0
  %1554 = vmatprep.subr.mxu0 0.0
  %1555 = vmatpush1.msra.mxu0 0.0
  %1556 = vmatprep.subr.mxu0 0.0
  %1557 = vmatpush1.msra.mxu0 0.0
  %1558 = vmatprep.subr.mxu0 0.0
  %1559 = vmatpush1.msra.mxu0 0.0
  %1560 = vmatprep.subr.mxu0 0.0
  %1561 = vmatpush1.msra.mxu0 0.0
  %1562 = vmatprep.subr.mxu0 0.0
  %1563 = vmatpush1.msra.mxu0 0.0
  %1564 = vmatprep.mubr.f32.mxu0 0.0
  %1565 = vmatmul.mubr.f32.gmra.mrb[0].mxu0 %v1483
  %v1566 = vpop.f32.mrb[0].mxu0
  %v1567 = vadd.f32 %v1481, %v1566
  %v1568 = vpop.f32.mrb[0].mxu0
  %1569 = vdwg.mxu0
  %v1570 = vmax.f32 %v1567, 0.0
  %v1571 = vmax.f32 %v1331, %v1475
  %1572 = vmatprep.subr.mxu0 0.0
  %1573 = vmatpush1.msra.mxu0 %v1484
  %1574 = vmatprep.subr.mxu0 0.0
  %1575 = vmatpush1.msra.mxu0 %v1485
  %1576 = vmatprep.subr.mxu0 0.0
  %1577 = vmatpush1.msra.mxu0 %v1486
  %1578 = vmatprep.subr.mxu0 0.0
  %1579 = vmatpush1.msra.mxu0 %v1487
  %1580 = vmatprep.subr.mxu0 0.0
  %1581 = vmatpush1.msra.mxu0 %v1488
  %1582 = vmatprep.subr.mxu0 0.0
  %1583 = vmatpush1.msra.mxu0 %v1489
  %1584 = vmatprep.subr.mxu0 0.0
  %1585 = vmatpush1.msra.mxu0 %v1490
  %1586 = vmatprep.subr.mxu0 0.0
  %1587 = vmatpush1.msra.mxu0 %v1491
  %1588 = vmatprep.subr.mxu0 0.0
  %1589 = vmatpush1.msra.mxu0 %v1492
  %1590 = vmatprep.subr.mxu0 0.0
  %1591 = vmatpush1.msra.mxu0 %v1493
  %1592 = vmatprep.subr.mxu0 0.0
  %1593 = vmatpush1.msra.mxu0 %v1494
  %1594 = vmatprep.subr.mxu0 0.0
  %1595 = vmatpush1.msra.mxu0 %v1495
  %1596 = vmatprep.subr.mxu0 0.0
  %1597 = vmatpush1.msra.mxu0 %v1496
  %1598 = vmatprep.subr.mxu0 0.0
  %1599 = vmatpush1.msra.mxu0 %v1497
  %1600 = vmatprep.subr.mxu0 0.0
  %1601 = vmatpush1.msra.mxu0 %v1498
  %1602 = vmatprep.subr.mxu0 0.0
  %1603 = vmatpush1.msra.mxu0 %v1499
  %1604 = vmatprep.subr.mxu0 0.0
  %1605 = vmatpush1.msra.mxu0 0.0
  %1606 = vmatprep.subr.mxu0 0.0
  %1607 = vmatpush1.msra.mxu0 0.0
  %1608 = vmatprep.subr.mxu0 0.0
  %1609 = vmatpush1.msra.mxu0 0.0
  %1610 = vmatprep.subr.mxu0 0.0
  %1611 = vmatpush1.msra.mxu0 0.0
  %1612 = vmatprep.subr.mxu0 0.0
  %1613 = vmatpush1.msra.mxu0 0.0
  %1614 = vmatprep.subr.mxu0 0.0
  %1615 = vmatpush1.msra.mxu0 0.0
  %1616 = vmatprep.subr.mxu0 0.0
  %1617 = vmatpush1.msra.mxu0 0.0
  %1618 = vmatprep.subr.mxu0 0.0
  %1619 = vmatpush1.msra.mxu0 0.0
  %1620 = vmatprep.subr.mxu0 0.0
  %1621 = vmatpush1.msra.mxu0 0.0
  %1622 = vmatprep.subr.mxu0 0.0
  %1623 = vmatpush1.msra.mxu0 0.0
  %1624 = vmatprep.subr.mxu0 0.0
  %1625 = vmatpush1.msra.mxu0 0.0
  %1626 = vmatprep.subr.mxu0 0.0
  %1627 = vmatpush1.msra.mxu0 0.0
  %1628 = vmatprep.subr.mxu0 0.0
  %1629 = vmatpush1.msra.mxu0 0.0
  %1630 = vmatprep.subr.mxu0 0.0
  %1631 = vmatpush1.msra.mxu0 0.0
  %1632 = vmatprep.subr.mxu0 0.0
  %1633 = vmatpush1.msra.mxu0 0.0
  %1634 = vmatprep.subr.mxu0 0.0
  %1635 = vmatpush1.msra.mxu0 0.0
  %1636 = vmatprep.mubr.f32.mxu0 0.0
  %1637 = vmatmul.mubr.f32.gmra.mrb[0].mxu0 %v1571
  %v1638 = vpop.f32.mrb[0].mxu0
  %v1639 = vadd.f32 %v1481, %v1638
  %v1640 = vpop.f32.mrb[0].mxu0
  %1641 = vdwg.mxu0
  %v1642 = vmax.f32 %v1639, 0.0
  %v1643 = vmax.f32 %v1570, %v1642
  %v1644 = vld [vmem:[%s7] sm:$0xff]
  %v1645 = vld [vmem:[%s7 + $0x8] sm:$0xff]
  %v1646 = vld [vmem:[%s7 + $0x10] sm:$0xff]
  %v1647 = vld [vmem:[%s7 + $0x18] sm:$0xff]
  %v1648 = vld [vmem:[%s7 + $0x20] sm:$0xff]
  %v1649 = vld [vmem:[%s7 + $0x28] sm:$0xff]
  %v1650 = vld [vmem:[%s7 + $0x30] sm:$0xff]
  %v1651 = vld [vmem:[%s7 + $0x38] sm:$0xff]
  %v1652 = vld [vmem:[%s7 + $0x40] sm:$0xff]
  %v1653 = vld [vmem:[%s7 + $0x48] sm:$0xff]
  %v1654 = vld [vmem:[%s7 + $0x50] sm:$0xff]
  %v1655 = vld [vmem:[%s7 + $0x58] sm:$0xff]
  %v1656 = vld [vmem:[%s7 + $0x60] sm:$0xff]
  %v1657 = vld [vmem:[%s7 + $0x68] sm:$0xff]
  %v1658 = vld [vmem:[%s7 + $0x70] sm:$0xff]
  %v1659 = vld [vmem:[%s7 + $0x78] sm:$0xff]
  %v1660 = vld [vmem:[%s8] sm:$0x3]
  %v1662 = vlaneseq
  %v1663 = vshrl.u32 %v1662, 7
  %v1664 = vsub.s32 0, %v1663
  %v1665 = vrot.slane %v1660, %v1664
  %v1666 = vlaneseq
  %v1667 = vshrl.u32 %v1666, 7
  %v1668 = vsub.s32 1, %v1667
  %v1669 = vrot.slane %v1660, %v1668
  %v1673 = vsel %vm899, %v1643, 0
  %1675 = vmatprep.subr.mxu0 %v1645
  %1676 = vmatpush1.msra.mxu0 %v1644
  %1677 = vmatprep.subr.mxu0 %v1647
  %1678 = vmatpush1.msra.mxu0 %v1646
  %1679 = vmatprep.subr.mxu0 %v1649
  %1680 = vmatpush1.msra.mxu0 %v1648
  %1681 = vmatprep.subr.mxu0 %v1651
  %1682 = vmatpush1.msra.mxu0 %v1650
  %1683 = vmatprep.subr.mxu0 %v1653
  %1684 = vmatpush1.msra.mxu0 %v1652
  %1685 = vmatprep.subr.mxu0 %v1655
  %1686 = vmatpush1.msra.mxu0 %v1654
  %1687 = vmatprep.subr.mxu0 %v1657
  %1688 = vmatpush1.msra.mxu0 %v1656
  %1689 = vmatprep.subr.mxu0 %v1659
  %1690 = vmatpush1.msra.mxu0 %v1658
  %1691 = vmatprep.subr.mxu0 0.0
  %1692 = vmatpush1.msra.mxu0 0.0
  %1693 = vmatprep.subr.mxu0 0.0
  %1694 = vmatpush1.msra.mxu0 0.0
  %1695 = vmatprep.subr.mxu0 0.0
  %1696 = vmatpush1.msra.mxu0 0.0
  %1697 = vmatprep.subr.mxu0 0.0
  %1698 = vmatpush1.msra.mxu0 0.0
  %1699 = vmatprep.subr.mxu0 0.0
  %1700 = vmatpush1.msra.mxu0 0.0
  %1701 = vmatprep.subr.mxu0 0.0
  %1702 = vmatpush1.msra.mxu0 0.0
  %1703 = vmatprep.subr.mxu0 0.0
  %1704 = vmatpush1.msra.mxu0 0.0
  %1705 = vmatprep.subr.mxu0 0.0
  %1706 = vmatpush1.msra.mxu0 0.0
  %1707 = vmatprep.subr.mxu0 0.0
  %1708 = vmatpush1.msra.mxu0 0.0
  %1709 = vmatprep.subr.mxu0 0.0
  %1710 = vmatpush1.msra.mxu0 0.0
  %1711 = vmatprep.subr.mxu0 0.0
  %1712 = vmatpush1.msra.mxu0 0.0
  %1713 = vmatprep.subr.mxu0 0.0
  %1714 = vmatpush1.msra.mxu0 0.0
  %1715 = vmatprep.subr.mxu0 0.0
  %1716 = vmatpush1.msra.mxu0 0.0
  %1717 = vmatprep.subr.mxu0 0.0
  %1718 = vmatpush1.msra.mxu0 0.0
  %1719 = vmatprep.subr.mxu0 0.0
  %1720 = vmatpush1.msra.mxu0 0.0
  %1721 = vmatprep.subr.mxu0 0.0
  %1722 = vmatpush1.msra.mxu0 0.0
  %1723 = vmatprep.subr.mxu0 0.0
  %1724 = vmatpush1.msra.mxu0 0.0
  %1725 = vmatprep.subr.mxu0 0.0
  %1726 = vmatpush1.msra.mxu0 0.0
  %1727 = vmatprep.subr.mxu0 0.0
  %1728 = vmatpush1.msra.mxu0 0.0
  %1729 = vmatprep.subr.mxu0 0.0
  %1730 = vmatpush1.msra.mxu0 0.0
  %1731 = vmatprep.subr.mxu0 0.0
  %1732 = vmatpush1.msra.mxu0 0.0
  %1733 = vmatprep.subr.mxu0 0.0
  %1734 = vmatpush1.msra.mxu0 0.0
  %1735 = vmatprep.subr.mxu0 0.0
  %1736 = vmatpush1.msra.mxu0 0.0
  %1737 = vmatprep.subr.mxu0 0.0
  %1738 = vmatpush1.msra.mxu0 0.0
  %1739 = vmatprep.mubr.f32.mxu0 0.0
  %1740 = vmatmul.mubr.f32.gmra.mrb[0].mxu0 %v1673
  %v1741 = vpop.f32.mrb[0].mxu0
  %v1742 = vadd.f32 %v1665, %v1741
  %v1743 = vpop.f32.mrb[0].mxu0
  %v1744 = vadd.f32 %v1669, %v1743
  %1745 = vdwg.mxu0
  %v1746 = vmax.f32 %v1742, 0.0
  %v1747 = vmax.f32 %v1744, 0.0
  %v1748 = vld [vmem:[%s9] sm:$0xff]
  %v1749 = vld [vmem:[%s9 + $0x8] sm:$0xff]
  %v1750 = vld [vmem:[%s9 + $0x10] sm:$0xff]
  %v1751 = vld [vmem:[%s9 + $0x18] sm:$0xff]
  %v1752 = vld [vmem:[%s9 + $0x20] sm:$0xff]
  %v1753 = vld [vmem:[%s9 + $0x28] sm:$0xff]
  %v1754 = vld [vmem:[%s9 + $0x30] sm:$0xff]
  %v1755 = vld [vmem:[%s9 + $0x38] sm:$0xff]
  %v1756 = vld [vmem:[%s9 + $0x40] sm:$0xff]
  %v1757 = vld [vmem:[%s9 + $0x48] sm:$0xff]
  %v1758 = vld [vmem:[%s9 + $0x50] sm:$0xff]
  %v1759 = vld [vmem:[%s9 + $0x58] sm:$0xff]
  %v1760 = vld [vmem:[%s9 + $0x60] sm:$0xff]
  %v1761 = vld [vmem:[%s9 + $0x68] sm:$0xff]
  %v1762 = vld [vmem:[%s9 + $0x70] sm:$0xff]
  %v1763 = vld [vmem:[%s9 + $0x78] sm:$0xff]
  %v1764 = vld [vmem:[%s9 + $0x80] sm:$0xff]
  %v1765 = vld [vmem:[%s9 + $0x88] sm:$0xff]
  %v1766 = vld [vmem:[%s9 + $0x90] sm:$0xff]
  %v1767 = vld [vmem:[%s9 + $0x98] sm:$0xff]
  %v1768 = vld [vmem:[%s9 + $0xa0] sm:$0xff]
  %v1769 = vld [vmem:[%s9 + $0xa8] sm:$0xff]
  %v1770 = vld [vmem:[%s9 + $0xb0] sm:$0xff]
  %v1771 = vld [vmem:[%s9 + $0xb8] sm:$0xff]
  %v1772 = vld [vmem:[%s9 + $0xc0] sm:$0xff]
  %v1773 = vld [vmem:[%s9 + $0xc8] sm:$0xff]
  %v1774 = vld [vmem:[%s9 + $0xd0] sm:$0xff]
  %v1775 = vld [vmem:[%s9 + $0xd8] sm:$0xff]
  %v1776 = vld [vmem:[%s9 + $0xe0] sm:$0xff]
  %v1777 = vld [vmem:[%s9 + $0xe8] sm:$0xff]
  %v1778 = vld [vmem:[%s9 + $0xf0] sm:$0xff]
  %v1779 = vld [vmem:[%s9 + $0xf8] sm:$0xff]
  %v1780 = vld [vmem:[%s10] sm:$0x1]
  %v1782 = vlaneseq
  %v1783 = vshrl.u32 %v1782, 7
  %v1784 = vsub.s32 0, %v1783
  %v1785 = vrot.slane %v1780, %v1784
  %1787 = vmatprep.subr.mxu0 0.0
  %1788 = vmatpush1.msra.mxu0 %v1748
  %1789 = vmatprep.subr.mxu0 0.0
  %1790 = vmatpush1.msra.mxu0 %v1749
  %1791 = vmatprep.subr.mxu0 0.0
  %1792 = vmatpush1.msra.mxu0 %v1750
  %1793 = vmatprep.subr.mxu0 0.0
  %1794 = vmatpush1.msra.mxu0 %v1751
  %1795 = vmatprep.subr.mxu0 0.0
  %1796 = vmatpush1.msra.mxu0 %v1752
  %1797 = vmatprep.subr.mxu0 0.0
  %1798 = vmatpush1.msra.mxu0 %v1753
  %1799 = vmatprep.subr.mxu0 0.0
  %1800 = vmatpush1.msra.mxu0 %v1754
  %1801 = vmatprep.subr.mxu0 0.0
  %1802 = vmatpush1.msra.mxu0 %v1755
  %1803 = vmatprep.subr.mxu0 0.0
  %1804 = vmatpush1.msra.mxu0 %v1756
  %1805 = vmatprep.subr.mxu0 0.0
  %1806 = vmatpush1.msra.mxu0 %v1757
  %1807 = vmatprep.subr.mxu0 0.0
  %1808 = vmatpush1.msra.mxu0 %v1758
  %1809 = vmatprep.subr.mxu0 0.0
  %1810 = vmatpush1.msra.mxu0 %v1759
  %1811 = vmatprep.subr.mxu0 0.0
  %1812 = vmatpush1.msra.mxu0 %v1760
  %1813 = vmatprep.subr.mxu0 0.0
  %1814 = vmatpush1.msra.mxu0 %v1761
  %1815 = vmatprep.subr.mxu0 0.0
  %1816 = vmatpush1.msra.mxu0 %v1762
  %1817 = vmatprep.subr.mxu0 0.0
  %1818 = vmatpush1.msra.mxu0 %v1763
  %1819 = vmatprep.subr.mxu0 0.0
  %1820 = vmatpush1.msra.mxu0 %v1764
  %1821 = vmatprep.subr.mxu0 0.0
  %1822 = vmatpush1.msra.mxu0 %v1765
  %1823 = vmatprep.subr.mxu0 0.0
  %1824 = vmatpush1.msra.mxu0 %v1766
  %1825 = vmatprep.subr.mxu0 0.0
  %1826 = vmatpush1.msra.mxu0 %v1767
  %1827 = vmatprep.subr.mxu0 0.0
  %1828 = vmatpush1.msra.mxu0 %v1768
  %1829 = vmatprep.subr.mxu0 0.0
  %1830 = vmatpush1.msra.mxu0 %v1769
  %1831 = vmatprep.subr.mxu0 0.0
  %1832 = vmatpush1.msra.mxu0 %v1770
  %1833 = vmatprep.subr.mxu0 0.0
  %1834 = vmatpush1.msra.mxu0 %v1771
  %1835 = vmatprep.subr.mxu0 0.0
  %1836 = vmatpush1.msra.mxu0 %v1772
  %1837 = vmatprep.subr.mxu0 0.0
  %1838 = vmatpush1.msra.mxu0 %v1773
  %1839 = vmatprep.subr.mxu0 0.0
  %1840 = vmatpush1.msra.mxu0 %v1774
  %1841 = vmatprep.subr.mxu0 0.0
  %1842 = vmatpush1.msra.mxu0 %v1775
  %1843 = vmatprep.subr.mxu0 0.0
  %1844 = vmatpush1.msra.mxu0 %v1776
  %1845 = vmatprep.subr.mxu0 0.0
  %1846 = vmatpush1.msra.mxu0 %v1777
  %1847 = vmatprep.subr.mxu0 0.0
  %1848 = vmatpush1.msra.mxu0 %v1778
  %1849 = vmatprep.subr.mxu0 0.0
  %1850 = vmatpush1.msra.mxu0 %v1779
  %1851 = vmatprep.mubr.f32.mxu0 %v1747
  %1852 = vmatmul.mubr.f32.gmra.mrb[0].mxu0 %v1746
  %v1853 = vpop.f32.mrb[0].mxu0
  %v1854 = vadd.f32 %v1785, %v1853
  %v1855 = vpop.f32.mrb[0].mxu0
  %1856 = vdwg.mxu0
  %1857 = vst [vmem:[%s11] sm:$0xff] %v1854
  // Predicated region
  $region46: #{meshcnn_forward.1} parent=0 // pred_check
    _
  $region47: #{meshcnn_forward.1} parent=0 // pred_check_branch
    %1859 = sbr.rel (0) target = $region49
  $region48: #{meshcnn_forward.1} parent=0 // pred_region
    _
  $region49: #{meshcnn_forward.1} parent=0 // pred_fallthru
    _
  // Predicated region
  $region50: #{meshcnn_forward.1} parent=0 // pred_check
    _
  $region51: #{meshcnn_forward.1} parent=0 // pred_check_branch
    %1861 = sbr.rel (0) target = $region53
  $region52: #{meshcnn_forward.1} parent=0 // pred_region
    _
  $region53: #{meshcnn_forward.1} parent=0 // pred_fallthru
    _

</llo_original>
